<compile_context>
chip_gen: v5e
topology: v5e:2x2
jax: 0.10.0
libtpu: 0.0.40
codegen_flags: <defaults>
</compile_context>

<pallas_src>
from typing import NamedTuple

import jax
import jax.numpy as jnp
import numpy as np
from jax.experimental import pallas as pl
from jax.experimental.pallas import tpu as pltpu


class ForwardOutput(NamedTuple):
    sae_out: jax.Array
    latent_acts: jax.Array
    fvu: jax.Array
    l0_loss: tuple          # (real_l0, approx_l0)
    l1_loss: jax.Array
    auxk_loss: jax.Array


def _round_up(a: int, b: int) -> int:
    return (a + b - 1) // b * b


# ---------------------------------------------------------------------------
# Pallas kernel
# ---------------------------------------------------------------------------
def _make_sae_kernel(n_valid: int, tb: int, num_latent_tiles: int,
                     mm_dtype, needs_row_mask: bool):
    """Kernel over grid (batch_tile i [parallel], latent_tile j [arbitrary])."""

    def kernel(x_ref, wenc_ref, benc_ref, bdec_ref, thr_ref, mask_ref, wdec_ref,
               sae_out_ref, latents_ref, xsum_ref, xsq_ref,
               l2_ref, l1_ref, l0_ref):
        i = pl.program_id(0)          # batch tile  (parallel)
        j = pl.program_id(1)          # latent tile (reduction)

        x = x_ref[...]                # (tb, d_in) f32 — resident across j
        b_dec = bdec_ref[...]         # (1, d_in)  f32

        if needs_row_mask:
            row = jax.lax.broadcasted_iota(jnp.int32, (tb, 1), 0)
            row_mask = ((i * tb + row) < n_valid).astype(jnp.float32)

        # ---- encode: JumpReLU gate fused into one select --------------------
        sae_in = (x - b_dec).astype(mm_dtype)
        out = jnp.dot(sae_in, wenc_ref[...],
                      preferred_element_type=jnp.float32) + benc_ref[...]
        pre = jnp.where(out > thr_ref[...], jnp.maximum(out, 0.0), 0.0)
        pre = pre * mask_ref[...]            # concrete mask (broadcast over batch)
        if needs_row_mask:
            pre = pre * row_mask             # zero out padded batch rows
        latents_ref[...] = pre

        # ---- decode partial: accumulate in the resident sae_out block -------
        partial = jnp.dot(pre.astype(mm_dtype), wdec_ref[...],
                          preferred_element_type=jnp.float32)

        @pl.when(j == 0)
        def _():
            sae_out_ref[...] = partial
            l1_ref[...] = jnp.zeros_like(l1_ref)
            l0_ref[...] = jnp.zeros_like(l0_ref)
            # per-column sums of x for the total-variance term (padded rows are 0)
            xsum_ref[...] = jnp.sum(x, axis=0, keepdims=True).reshape(xsum_ref.shape)
            xsq_ref[...] = jnp.sum(x * x, axis=0, keepdims=True).reshape(xsq_ref.shape)

        @pl.when(j > 0)
        def _():
            sae_out_ref[...] += partial

        # l1 / l0 partials accumulated across latent tiles (scalar broadcast)
        l1_ref[...] = l1_ref[...] + jnp.sum(jnp.abs(pre))
        l0_ref[...] = l0_ref[...] + jnp.sum((pre != 0.0).astype(jnp.float32))

        @pl.when(j == num_latent_tiles - 1)
        def _():
            recon = sae_out_ref[...] + b_dec
            sae_out_ref[...] = recon
            e = recon - x
            if needs_row_mask:
                e = e * row_mask
            l2_ref[...] = jnp.full(l2_ref.shape, jnp.sum(e * e), jnp.float32)

    return kernel


# ---------------------------------------------------------------------------
# Plain-JAX glue
# ---------------------------------------------------------------------------
def concrete_sample(logits, training, key, temperature):
    gamma, zeta = -0.1, 1.1
    if training:
        # TODO(synk): torch uses global RNG state; here noise is driven by an
        # explicit JAX PRNG key.
        noise = jax.random.uniform(key, logits.shape,
                                   minval=1e-6, maxval=1.0 - 1e-6)
        z = jnp.log(noise) - jnp.log(1.0 - noise)
        y = jax.nn.sigmoid((logits + z) / temperature)
        return jnp.clip(y * (zeta - gamma) + gamma, 0.0, 1.0)
    # eval mode: hard concrete
    return (logits > 0).astype(logits.dtype)


def approx_l0_loss(feature_mask, temperature):
    gamma, zeta = -0.1, 1.1
    pre_prob = jax.nn.sigmoid(
        feature_mask - temperature * jnp.log(jnp.asarray(-gamma / zeta)))
    return pre_prob.mean()


# ---------------------------------------------------------------------------
# Wrapper
# ---------------------------------------------------------------------------
def jr_sae_forward(x, params, *, training=False, key=None, temperature=0.5,
                   block_batch=256, block_latent=1024,
                   matmul_dtype=jnp.bfloat16):
    """Forward pass of JRSae. x: [N, d_in] float32."""
    x = x.astype(jnp.float32)
    n, d_in = x.shape
    w_enc = params["w_enc"]                 # [num_latents, d_in]
    num_latents = w_enc.shape[0]

    mask = concrete_sample(params["feature_mask"], training, key, temperature)

    # ---- tile geometry ------------------------------------------------------
    tb = min(block_batch, _round_up(n, 8))
    n_pad = _round_up(n, tb)
    if num_latents <= block_latent:
        tl = num_latents
    else:
        assert block_latent % 128 == 0, "block_latent must be a multiple of 128"
        tl = block_latent
    l_pad = _round_up(num_latents, tl)
    nbt = n_pad // tb                       # batch tiles
    nlt = l_pad // tl                       # latent tiles

    # ---- operand plumbing (lane-friendly layouts, bf16 matmul operands) -----
    wenc_t = jnp.transpose(w_enc).astype(matmul_dtype)            # [d_in, L]
    wdec = params["w_dec"].astype(matmul_dtype)                   # [L, d_in]
    benc = params["b_enc"].reshape(1, num_latents).astype(jnp.float32)
    thr = params["threshold"].reshape(1, num_latents).astype(jnp.float32)
    mask2 = mask.reshape(1, num_latents).astype(jnp.float32)
    bdec = params["b_dec"].reshape(1, d_in).astype(jnp.float32)

    if l_pad != num_latents:
        padl = l_pad - num_latents
        wenc_t = jnp.pad(wenc_t, ((0, 0), (0, padl)))
        wdec = jnp.pad(wdec, ((0, padl), (0, 0)))
        benc = jnp.pad(benc, ((0, 0), (0, padl)))
        thr = jnp.pad(thr, ((0, 0), (0, padl)))
        mask2 = jnp.pad(mask2, ((0, 0), (0, padl)))
    xk = x if n_pad == n else jnp.pad(x, ((0, n_pad - n), (0, 0)))

    kernel = _make_sae_kernel(n, tb, nlt, matmul_dtype, n_pad != n)

    batch_tile = lambda i, j: (i, 0)
    latent_tile = lambda i, j: (0, j)
    both_tile = lambda i, j: (i, j)
    stat_tile = lambda i, j: (i, 0, 0)

    in_specs = [
        pl.BlockSpec((tb, d_in), batch_tile),            # x
        pl.BlockSpec((d_in, tl), latent_tile),           # W_enc^T tile
        pl.BlockSpec((1, tl), latent_tile),              # b_enc tile
        pl.BlockSpec((1, d_in), lambda i, j: (0, 0)),    # b_dec
        pl.BlockSpec((1, tl), latent_tile),              # threshold tile
        pl.BlockSpec((1, tl), latent_tile),              # concrete mask tile
        pl.BlockSpec((tl, d_in), lambda i, j: (j, 0)),   # W_dec tile
    ]
    out_specs = [
        pl.BlockSpec((tb, d_in), batch_tile),            # sae_out (recon acc)
        pl.BlockSpec((tb, tl), both_tile),               # latents
        pl.BlockSpec((1, 1, d_in), stat_tile),           # per-tile sum(x)  (cols)
        pl.BlockSpec((1, 1, d_in), stat_tile),           # per-tile sum(x^2) (cols)
        pl.BlockSpec((1, 1, 128), stat_tile),            # per-tile sum(e^2)
        pl.BlockSpec((1, 1, 128), stat_tile),            # per-tile l1
        pl.BlockSpec((1, 1, 128), stat_tile),            # per-tile l0 count
    ]
    out_shape = (
        jax.ShapeDtypeStruct((n_pad, d_in), jnp.float32),
        jax.ShapeDtypeStruct((n_pad, l_pad), jnp.float32),
        jax.ShapeDtypeStruct((nbt, 1, d_in), jnp.float32),
        jax.ShapeDtypeStruct((nbt, 1, d_in), jnp.float32),
        jax.ShapeDtypeStruct((nbt, 1, 128), jnp.float32),
        jax.ShapeDtypeStruct((nbt, 1, 128), jnp.float32),
        jax.ShapeDtypeStruct((nbt, 1, 128), jnp.float32),
    )

    # ---- VMEM budget / cost hint --------------------------------------------
    wb = jnp.dtype(matmul_dtype).itemsize
    vmem_est = 2 * (tb * d_in * 4                       # x
                    + (d_in * tl + tl * d_in) * wb      # weight tiles
                    + (3 * tl + d_in) * 4               # b_enc/thr/mask + b_dec
                    + tb * d_in * 4 + tb * tl * 4       # sae_out + latents blocks
                    + (2 * d_in + 3 * 128) * 4) + (2 << 20)
    vmem_limit = None
    if vmem_est > (32 << 20):
        # raise the scoped limit only when needed; cap for v7x (64 MiB physical)
        vmem_limit = int(min(vmem_est * 5 // 4, 64 << 20))

    flops = 4 * n_pad * d_in * l_pad                    # two matmuls, 2 flop/MAC
    bytes_accessed = int(2 * n_pad * d_in * 4 + n_pad * l_pad * 4
                         + nbt * 2 * d_in * l_pad * wb
                         + nbt * (3 * l_pad + d_in) * 4
                         + nbt * (2 * d_in + 3 * 128) * 4)

    # NOTE: invariant small blocks (b_enc/b_dec/thr/mask) could be single-
    # buffered via pipeline_mode=pl.Buffered(1); left at the default here —
    # they are tiny relative to the weight tiles.
    outs = pl.pallas_call(
        kernel,
        out_shape=out_shape,
        grid_spec=pltpu.PrefetchScalarGridSpec(
            num_scalar_prefetch=0,
            grid=(nbt, nlt),
            in_specs=in_specs,
            out_specs=out_specs,
        ),
        compiler_params=pltpu.CompilerParams(
            dimension_semantics=("parallel", "arbitrary"),
            vmem_limit_bytes=vmem_limit),
        cost_estimate=pl.CostEstimate(flops=flops, transcendentals=0,
                                      bytes_accessed=bytes_accessed),
    )(xk, wenc_t, benc, bdec, thr, mask2, wdec)

    sae_full, lat_full, xsum, xsq, l2p, l1p, l0p = outs

    sae_out = sae_full[:n]
    latents = lat_full[:n, :num_latents]

    # reduce the per-batch-tile partials (pairwise/partial-sum reduction)
    col_sum = jnp.sum(xsum[:, 0, :], axis=0)            # (d_in,)
    col_sq = jnp.sum(xsq[:, 0, :], axis=0)              # (d_in,)
    l2 = jnp.sum(l2p[:, 0, 0])
    l1 = jnp.sum(l1p[:, 0, 0])
    l0_count = jnp.sum(l0p[:, 0, 0])

    mean = col_sum / n
    total_variance = jnp.sum(col_sq) - n * jnp.sum(mean * mean)
    fvu = l2 / total_variance
    real_l0 = l0_count / n

    approx_l0 = approx_l0_loss(params["feature_mask"], temperature)
    # TODO(synk): auxk (dead-latent top-k) path not implemented; forward with
    # dead_mask=None never exercises it.
    auxk = jnp.zeros((), jnp.float32)

    return ForwardOutput(sae_out, latents, fvu, (real_l0, approx_l0), l1, auxk)


# ---------------------------------------------------------------------------
# Deterministic parameter init (mirrors JRSae.__init__)
# ---------------------------------------------------------------------------
def init_params(key, d_in, expansion_factor=4, normalize_decoder=True):
    num_latents = d_in * expansion_factor
    k_enc, k_mask = jax.random.split(key)
    bound = 1.0 / np.sqrt(d_in)
    w_enc = jax.random.uniform(k_enc, (num_latents, d_in), jnp.float32,
                               minval=-bound, maxval=bound)
    b_enc = jnp.zeros((num_latents,), jnp.float32)
    w_dec = w_enc.copy()
    if normalize_decoder:
        norm = jnp.linalg.norm(w_dec, axis=1, keepdims=True)
        w_dec = w_dec / (norm + np.finfo(np.float32).eps)
    return {
        "w_enc": w_enc,
        "b_enc": b_enc,
        "w_dec": w_dec,
        "b_dec": jnp.zeros((d_in,), jnp.float32),
        "threshold": jnp.zeros((num_latents,), jnp.float32),
        "feature_mask": jax.random.normal(k_mask, (num_latents,), jnp.float32),
    }


# ---------------------------------------------------------------------------
# Pure-JAX reference (same matmul precision as the kernel) for verification
# ---------------------------------------------------------------------------
def reference_forward(x, params, matmul_dtype=jnp.bfloat16):
    mask = (params["feature_mask"] > 0).astype(jnp.float32)
    sae_in = x - params["b_dec"]
    out = jnp.dot(sae_in.astype(matmul_dtype),
                  params["w_enc"].T.astype(matmul_dtype),
                  preferred_element_type=jnp.float32) + params["b_enc"]
    pre = jnp.where(out > params["threshold"], jnp.maximum(out, 0.0), 0.0) * mask
    sae_out = jnp.dot(pre.astype(matmul_dtype),
                      params["w_dec"].astype(matmul_dtype),
                      preferred_element_type=jnp.float32) + params["b_dec"]
    e = sae_out - x
    tv = jnp.sum((x - x.mean(0)) ** 2)
    fvu = jnp.sum(e ** 2) / tv
    l1 = jnp.sum(jnp.abs(pre))
    real_l0 = jnp.mean(jnp.sum((pre != 0).astype(jnp.float32), -1))
    return sae_out, pre, fvu, real_l0, l1


if __name__ == "__main__":
    key = jax.random.PRNGKey(0)
    k_param, k_x = jax.random.split(key)

    batch, d_in, expansion = 40, 128, 4        # num_latents = 512
    params = init_params(k_param, d_in, expansion)
    x = jax.random.normal(k_x, (batch, d_in), jnp.float32)

    ref_sae, ref_pre, ref_fvu, ref_l0, ref_l1 = reference_forward(x, params)

    # Config 1: small tiles — exercises batch padding (40 -> 48 rows with
    # tb=16), latent tiling + latent padding (512 -> 768 with tl=384), and
    # the multi-step recon / loss accumulation over both grid axes.
    out = jr_sae_forward(x, params, training=False,
                         block_batch=16, block_latent=384)
    jax.block_until_ready(out.sae_out)

    np.testing.assert_allclose(np.asarray(out.sae_out), np.asarray(ref_sae),
                               rtol=1e-3, atol=1e-3)
    np.testing.assert_allclose(np.asarray(out.latent_acts), np.asarray(ref_pre),
                               rtol=1e-3, atol=1e-3)
    np.testing.assert_allclose(float(out.fvu), float(ref_fvu),
                               rtol=2e-3, atol=1e-4)
    np.testing.assert_allclose(float(out.l0_loss[0]), float(ref_l0),
                               rtol=2e-3, atol=0.1)
    np.testing.assert_allclose(float(out.l1_loss), float(ref_l1), rtol=2e-3)

    # Config 2: default (large) tiles — single latent tile, no padding.
    out2 = jr_sae_forward(x, params, training=False)
    jax.block_until_ready(out2.sae_out)
    np.testing.assert_allclose(np.asarray(out2.sae_out), np.asarray(ref_sae),
                               rtol=1e-3, atol=1e-3)
    np.testing.assert_allclose(float(out2.fvu), float(ref_fvu),
                               rtol=2e-3, atol=1e-4)

    print("KERNEL_OK")
</pallas_src>

<mosaic_0001>
module attributes {stable_mosaic.version = 11 : i64} {
  func.func @kernel(%arg0: i32, %arg1: i32, %arg2: memref<16x128xf32, #tpu.memory_space<vmem>>, %arg3: memref<128x384xbf16, #tpu.memory_space<vmem>>, %arg4: memref<1x384xf32, #tpu.memory_space<vmem>>, %arg5: memref<1x128xf32, #tpu.memory_space<vmem>>, %arg6: memref<1x384xf32, #tpu.memory_space<vmem>>, %arg7: memref<1x384xf32, #tpu.memory_space<vmem>>, %arg8: memref<384x128xbf16, #tpu.memory_space<vmem>>, %arg9: memref<16x128xf32, #tpu.memory_space<vmem>>, %arg10: memref<16x384xf32, #tpu.memory_space<vmem>>, %arg11: memref<1x1x128xf32, #tpu.memory_space<vmem>>, %arg12: memref<1x1x128xf32, #tpu.memory_space<vmem>>, %arg13: memref<1x1x128xf32, #tpu.memory_space<vmem>>, %arg14: memref<1x1x128xf32, #tpu.memory_space<vmem>>, %arg15: memref<1x1x128xf32, #tpu.memory_space<vmem>>) attributes {dimension_semantics = [#tpu.dimension_semantics<parallel>, #tpu.dimension_semantics<arbitrary>], iteration_bounds = array<i64: 3, 2>, scalar_prefetch = 0 : i64, scratch_operands = 0 : i64, tpu.core_type = #tpu.core_type<tc>, window_params = [{transform_indices = @transform_0, window_bounds = array<i64: 16, 128>}, {transform_indices = @transform_1, window_bounds = array<i64: 128, 384>}, {transform_indices = @transform_2, window_bounds = array<i64: 1, 384>}, {pipeline_mode = #tpu.pipeline_mode<synchronous>, transform_indices = @transform_3, window_bounds = array<i64: 1, 128>}, {transform_indices = @transform_4, window_bounds = array<i64: 1, 384>}, {transform_indices = @transform_5, window_bounds = array<i64: 1, 384>}, {transform_indices = @transform_6, window_bounds = array<i64: 384, 128>}, {transform_indices = @transform_7, window_bounds = array<i64: 16, 128>}, {transform_indices = @transform_8, window_bounds = array<i64: 16, 384>}, {transform_indices = @transform_9, window_bounds = array<i64: 1, 1, 128>}, {transform_indices = @transform_10, window_bounds = array<i64: 1, 1, 128>}, {transform_indices = @transform_11, window_bounds = array<i64: 1, 1, 128>}, {transform_indices = @transform_12, window_bounds = array<i64: 1, 1, 128>}, {transform_indices = @transform_13, window_bounds = array<i64: 1, 1, 128>}]} {
    %c0 = arith.constant 0 : index
    %c0_0 = arith.constant 0 : index
    %0 = vector.load %arg2[%c0, %c0_0] : memref<16x128xf32, #tpu.memory_space<vmem>>, vector<16x128xf32>
    %c0_1 = arith.constant 0 : index
    %c0_2 = arith.constant 0 : index
    %1 = vector.load %arg5[%c0_1, %c0_2] : memref<1x128xf32, #tpu.memory_space<vmem>>, vector<1x128xf32>
    %2 = tpu.iota {dimensions = array<i32: 0>} : vector<16x1xi32>
    %c16_i32 = arith.constant 16 : i32
    %3 = arith.muli %arg0, %c16_i32 : i32
    %4 = vector.broadcast %3 : i32 to vector<16x1xi32>
    %5 = arith.addi %4, %2 : vector<16x1xi32>
    %c40_i32 = arith.constant 40 : i32
    %6 = vector.broadcast %c40_i32 : i32 to vector<16x1xi32>
    %7 = arith.cmpi slt, %5, %6 : vector<16x1xi32>
    %8 = arith.extui %7 : vector<16x1xi1> to vector<16x1xi32>
    %9 = arith.sitofp %8 : vector<16x1xi32> to vector<16x1xf32>
    %10 = vector.broadcast %1 : vector<1x128xf32> to vector<16x128xf32>
    %11 = arith.subf %0, %10 : vector<16x128xf32>
    %12 = arith.truncf %11 : vector<16x128xf32> to vector<16x128xbf16>
    %c0_3 = arith.constant 0 : index
    %c0_4 = arith.constant 0 : index
    %13 = vector.load %arg3[%c0_3, %c0_4] : memref<128x384xbf16, #tpu.memory_space<vmem>>, vector<128x384xbf16>
    %cst = arith.constant dense<0.000000e+00> : vector<16x384xf32>
    %14 = tpu.matmul %12, %13, %cst {dimension_numbers = #tpu.dot_dimension_numbers<[1], [0], [0], [1], [0, 0, 1, 1], [], []>} : vector<16x128xbf16>, vector<128x384xbf16>, vector<16x384xf32> -> vector<16x384xf32>
    %c0_5 = arith.constant 0 : index
    %c0_6 = arith.constant 0 : index
    %15 = vector.load %arg4[%c0_5, %c0_6] : memref<1x384xf32, #tpu.memory_space<vmem>>, vector<1x384xf32>
    %16 = vector.broadcast %15 : vector<1x384xf32> to vector<16x384xf32>
    %17 = arith.addf %14, %16 : vector<16x384xf32>
    %c0_7 = arith.constant 0 : index
    %c0_8 = arith.constant 0 : index
    %18 = vector.load %arg6[%c0_7, %c0_8] : memref<1x384xf32, #tpu.memory_space<vmem>>, vector<1x384xf32>
    %19 = vector.broadcast %18 : vector<1x384xf32> to vector<16x384xf32>
    %20 = arith.cmpf ogt, %17, %19 : vector<16x384xf32>
    %cst_9 = arith.constant 0.000000e+00 : f32
    %21 = vector.broadcast %cst_9 : f32 to vector<16x384xf32>
    %22 = arith.maximumf %17, %21 : vector<16x384xf32>
    %cst_10 = arith.constant 0.000000e+00 : f32
    %23 = vector.broadcast %cst_10 : f32 to vector<16x384xf32>
    %24 = arith.select %20, %22, %23 : vector<16x384xi1>, vector<16x384xf32>
    %c0_11 = arith.constant 0 : index
    %c0_12 = arith.constant 0 : index
    %25 = vector.load %arg7[%c0_11, %c0_12] : memref<1x384xf32, #tpu.memory_space<vmem>>, vector<1x384xf32>
    %26 = vector.broadcast %25 : vector<1x384xf32> to vector<16x384xf32>
    %27 = arith.mulf %24, %26 : vector<16x384xf32>
    %28 = vector.broadcast %9 : vector<16x1xf32> to vector<16x384xf32>
    %29 = arith.mulf %27, %28 : vector<16x384xf32>
    %c0_13 = arith.constant 0 : index
    %c0_14 = arith.constant 0 : index
    %30 = vector.load %arg10[%c0_13, %c0_14] : memref<16x384xf32, #tpu.memory_space<vmem>>, vector<16x384xf32>
    tpu.vector_store %arg10[%c0_13, %c0_14], %29 {strides = array<i32>} : memref<16x384xf32, #tpu.memory_space<vmem>>, vector<16x384xf32>,
    %31 = arith.truncf %29 : vector<16x384xf32> to vector<16x384xbf16>
    %c0_15 = arith.constant 0 : index
    %c0_16 = arith.constant 0 : index
    %32 = vector.load %arg8[%c0_15, %c0_16] : memref<384x128xbf16, #tpu.memory_space<vmem>>, vector<384x128xbf16>
    %cst_17 = arith.constant dense<0.000000e+00> : vector<16x128xf32>
    %33 = tpu.matmul %31, %32, %cst_17 {dimension_numbers = #tpu.dot_dimension_numbers<[1], [0], [0], [1], [0, 0, 1, 1], [], []>} : vector<16x384xbf16>, vector<384x128xbf16>, vector<16x128xf32> -> vector<16x128xf32>
    %c0_i32 = arith.constant 0 : i32
    %34 = arith.cmpi eq, %arg1, %c0_i32 : i32
    %35 = arith.extui %34 : i1 to i32
    %c0_i32_18 = arith.constant 0 : i32
    %36 = arith.cmpi ne, %35, %c0_i32_18 : i32
    scf.if %36 {
      %c0_37 = arith.constant 0 : index
      %c0_38 = arith.constant 0 : index
      %64 = vector.load %arg9[%c0_37, %c0_38] : memref<16x128xf32, #tpu.memory_space<vmem>>, vector<16x128xf32>
      tpu.vector_store %arg9[%c0_37, %c0_38], %33 {strides = array<i32>} : memref<16x128xf32, #tpu.memory_space<vmem>>, vector<16x128xf32>,
      %cst_39 = arith.constant 0.000000e+00 : f32
      %65 = vector.broadcast %cst_39 : f32 to vector<1x1x128xf32>
      %c0_40 = arith.constant 0 : index
      %c0_41 = arith.constant 0 : index
      %c0_42 = arith.constant 0 : index
      %66 = vector.load %arg14[%c0_40, %c0_41, %c0_42] : memref<1x1x128xf32, #tpu.memory_space<vmem>>, vector<1x1x128xf32>
      tpu.vector_store %arg14[%c0_40, %c0_41, %c0_42], %65 {strides = array<i32>} : memref<1x1x128xf32, #tpu.memory_space<vmem>>, vector<1x1x128xf32>,
      %cst_43 = arith.constant 0.000000e+00 : f32
      %67 = vector.broadcast %cst_43 : f32 to vector<1x1x128xf32>
      %c0_44 = arith.constant 0 : index
      %c0_45 = arith.constant 0 : index
      %c0_46 = arith.constant 0 : index
      %68 = vector.load %arg15[%c0_44, %c0_45, %c0_46] : memref<1x1x128xf32, #tpu.memory_space<vmem>>, vector<1x1x128xf32>
      tpu.vector_store %arg15[%c0_44, %c0_45, %c0_46], %67 {strides = array<i32>} : memref<1x1x128xf32, #tpu.memory_space<vmem>>, vector<1x1x128xf32>,
      %cst_47 = arith.constant dense<0.000000e+00> : vector<128xf32>
      %69 = vector.multi_reduction <add>, %0, %cst_47 [0] : vector<16x128xf32> to vector<128xf32>
      %70 = vector.shape_cast %69 : vector<128xf32> to vector<1x128xf32>
      %71 = vector.shape_cast %70 : vector<1x128xf32> to vector<1x1x128xf32>
      %c0_48 = arith.constant 0 : index
      %c0_49 = arith.constant 0 : index
      %c0_50 = arith.constant 0 : index
      %72 = vector.load %arg11[%c0_48, %c0_49, %c0_50] : memref<1x1x128xf32, #tpu.memory_space<vmem>>, vector<1x1x128xf32>
      tpu.vector_store %arg11[%c0_48, %c0_49, %c0_50], %71 {strides = array<i32>} : memref<1x1x128xf32, #tpu.memory_space<vmem>>, vector<1x1x128xf32>,
      %73 = arith.mulf %0, %0 : vector<16x128xf32>
      %cst_51 = arith.constant dense<0.000000e+00> : vector<128xf32>
      %74 = vector.multi_reduction <add>, %73, %cst_51 [0] : vector<16x128xf32> to vector<128xf32>
      %75 = vector.shape_cast %74 : vector<128xf32> to vector<1x128xf32>
      %76 = vector.shape_cast %75 : vector<1x128xf32> to vector<1x1x128xf32>
      %c0_52 = arith.constant 0 : index
      %c0_53 = arith.constant 0 : index
      %c0_54 = arith.constant 0 : index
      %77 = vector.load %arg12[%c0_52, %c0_53, %c0_54] : memref<1x1x128xf32, #tpu.memory_space<vmem>>, vector<1x1x128xf32>
      tpu.vector_store %arg12[%c0_52, %c0_53, %c0_54], %76 {strides = array<i32>} : memref<1x1x128xf32, #tpu.memory_space<vmem>>, vector<1x1x128xf32>,
    } else {
    }
    %c0_i32_19 = arith.constant 0 : i32
    %37 = arith.cmpi sgt, %arg1, %c0_i32_19 : i32
    %38 = arith.extui %37 : i1 to i32
    %c0_i32_20 = arith.constant 0 : i32
    %39 = arith.cmpi ne, %38, %c0_i32_20 : i32
    scf.if %39 {
      %c0_37 = arith.constant 0 : index
      %c0_38 = arith.constant 0 : index
      %64 = vector.load %arg9[%c0_37, %c0_38] : memref<16x128xf32, #tpu.memory_space<vmem>>, vector<16x128xf32>
      %65 = arith.addf %64, %33 : vector<16x128xf32>
      %c0_39 = arith.constant 0 : index
      %c0_40 = arith.constant 0 : index
      %66 = vector.load %arg9[%c0_39, %c0_40] : memref<16x128xf32, #tpu.memory_space<vmem>>, vector<16x128xf32>
      tpu.vector_store %arg9[%c0_39, %c0_40], %65 {strides = array<i32>} : memref<16x128xf32, #tpu.memory_space<vmem>>, vector<16x128xf32>,
    } else {
    }
    %c0_21 = arith.constant 0 : index
    %c0_22 = arith.constant 0 : index
    %c0_23 = arith.constant 0 : index
    %40 = vector.load %arg14[%c0_21, %c0_22, %c0_23] : memref<1x1x128xf32, #tpu.memory_space<vmem>>, vector<1x1x128xf32>
    %41 = math.absf %29 : vector<16x384xf32>
    %42 = vector.shape_cast %41 : vector<16x384xf32> to vector<1x16x384xf32>
    %cst_24 = arith.constant dense<0.000000e+00> : vector<1xf32>
    %43 = vector.multi_reduction <add>, %42, %cst_24 [1, 2] : vector<1x16x384xf32> to vector<1xf32>
    %44 = vector.shape_cast %43 : vector<1xf32> to vector<1x1x1xf32>
    %45 = vector.extract %44[0, 0, 0] : f32 from vector<1x1x1xf32>
    %46 = vector.broadcast %45 : f32 to vector<1x1x128xf32>
    %47 = arith.addf %40, %46 : vector<1x1x128xf32>
    %c0_25 = arith.constant 0 : index
    %c0_26 = arith.constant 0 : index
    %c0_27 = arith.constant 0 : index
    %48 = vector.load %arg14[%c0_25, %c0_26, %c0_27] : memref<1x1x128xf32, #tpu.memory_space<vmem>>, vector<1x1x128xf32>
    tpu.vector_store %arg14[%c0_25, %c0_26, %c0_27], %47 {strides = array<i32>} : memref<1x1x128xf32, #tpu.memory_space<vmem>>, vector<1x1x128xf32>,
    %c0_28 = arith.constant 0 : index
    %c0_29 = arith.constant 0 : index
    %c0_30 = arith.constant 0 : index
    %49 = vector.load %arg15[%c0_28, %c0_29, %c0_30] : memref<1x1x128xf32, #tpu.memory_space<vmem>>, vector<1x1x128xf32>
    %cst_31 = arith.constant 0.000000e+00 : f32
    %50 = vector.broadcast %cst_31 : f32 to vector<16x384xf32>
    %51 = arith.cmpf one, %29, %50 : vector<16x384xf32>
    %52 = arith.extui %51 : vector<16x384xi1> to vector<16x384xi32>
    %53 = arith.sitofp %52 : vector<16x384xi32> to vector<16x384xf32>
    %54 = vector.shape_cast %53 : vector<16x384xf32> to vector<1x16x384xf32>
    %cst_32 = arith.constant dense<0.000000e+00> : vector<1xf32>
    %55 = vector.multi_reduction <add>, %54, %cst_32 [1, 2] : vector<1x16x384xf32> to vector<1xf32>
    %56 = vector.shape_cast %55 : vector<1xf32> to vector<1x1x1xf32>
    %57 = vector.extract %56[0, 0, 0] : f32 from vector<1x1x1xf32>
    %58 = vector.broadcast %57 : f32 to vector<1x1x128xf32>
    %59 = arith.addf %49, %58 : vector<1x1x128xf32>
    %c0_33 = arith.constant 0 : index
    %c0_34 = arith.constant 0 : index
    %c0_35 = arith.constant 0 : index
    %60 = vector.load %arg15[%c0_33, %c0_34, %c0_35] : memref<1x1x128xf32, #tpu.memory_space<vmem>>, vector<1x1x128xf32>
    tpu.vector_store %arg15[%c0_33, %c0_34, %c0_35], %59 {strides = array<i32>} : memref<1x1x128xf32, #tpu.memory_space<vmem>>, vector<1x1x128xf32>,
    %c1_i32 = arith.constant 1 : i32
    %61 = arith.cmpi eq, %arg1, %c1_i32 : i32
    %62 = arith.extui %61 : i1 to i32
    %c0_i32_36 = arith.constant 0 : i32
    %63 = arith.cmpi ne, %62, %c0_i32_36 : i32
    scf.if %63 {
      %c0_37 = arith.constant 0 : index
      %c0_38 = arith.constant 0 : index
      %64 = vector.load %arg9[%c0_37, %c0_38] : memref<16x128xf32, #tpu.memory_space<vmem>>, vector<16x128xf32>
      %65 = vector.broadcast %1 : vector<1x128xf32> to vector<16x128xf32>
      %66 = arith.addf %64, %65 : vector<16x128xf32>
      %c0_39 = arith.constant 0 : index
      %c0_40 = arith.constant 0 : index
      %67 = vector.load %arg9[%c0_39, %c0_40] : memref<16x128xf32, #tpu.memory_space<vmem>>, vector<16x128xf32>
      tpu.vector_store %arg9[%c0_39, %c0_40], %66 {strides = array<i32>} : memref<16x128xf32, #tpu.memory_space<vmem>>, vector<16x128xf32>,
      %68 = arith.subf %66, %0 : vector<16x128xf32>
      %69 = vector.broadcast %9 : vector<16x1xf32> to vector<16x128xf32>
      %70 = arith.mulf %68, %69 : vector<16x128xf32>
      %71 = arith.mulf %70, %70 : vector<16x128xf32>
      %72 = vector.shape_cast %71 : vector<16x128xf32> to vector<1x16x128xf32>
      %cst_41 = arith.constant dense<0.000000e+00> : vector<1xf32>
      %73 = vector.multi_reduction <add>, %72, %cst_41 [1, 2] : vector<1x16x128xf32> to vector<1xf32>
      %74 = vector.shape_cast %73 : vector<1xf32> to vector<1x1x1xf32>
      %75 = vector.extract %74[0, 0, 0] : f32 from vector<1x1x1xf32>
      %76 = vector.broadcast %75 : f32 to vector<1x1x128xf32>
      %c0_42 = arith.constant 0 : index
      %c0_43 = arith.constant 0 : index
      %c0_44 = arith.constant 0 : index
      %77 = vector.load %arg13[%c0_42, %c0_43, %c0_44] : memref<1x1x128xf32, #tpu.memory_space<vmem>>, vector<1x1x128xf32>
      tpu.vector_store %arg13[%c0_42, %c0_43, %c0_44], %76 {strides = array<i32>} : memref<1x1x128xf32, #tpu.memory_space<vmem>>, vector<1x1x128xf32>,
    } else {
    }
    return
  }
  func.func @transform_0(%arg0: i32, %arg1: i32) -> (i32, i32) {
    %c0_i32 = arith.constant 0 : i32
    %c0_i32_0 = arith.constant 0 : i32
    return %arg0, %c0_i32 : i32, i32
  }
  func.func @transform_1(%arg0: i32, %arg1: i32) -> (i32, i32) {
    %c0_i32 = arith.constant 0 : i32
    %c0_i32_0 = arith.constant 0 : i32
    return %c0_i32, %arg1 : i32, i32
  }
  func.func @transform_2(%arg0: i32, %arg1: i32) -> (i32, i32) {
    %c0_i32 = arith.constant 0 : i32
    %c0_i32_0 = arith.constant 0 : i32
    return %c0_i32, %arg1 : i32, i32
  }
  func.func @transform_3(%arg0: i32, %arg1: i32) -> (i32, i32) {
    %c0_i32 = arith.constant 0 : i32
    %c0_i32_0 = arith.constant 0 : i32
    %c0_i32_1 = arith.constant 0 : i32
    return %c0_i32, %c0_i32_0 : i32, i32
  }
  func.func @transform_4(%arg0: i32, %arg1: i32) -> (i32, i32) {
    %c0_i32 = arith.constant 0 : i32
    %c0_i32_0 = arith.constant 0 : i32
    return %c0_i32, %arg1 : i32, i32
  }
  func.func @transform_5(%arg0: i32, %arg1: i32) -> (i32, i32) {
    %c0_i32 = arith.constant 0 : i32
    %c0_i32_0 = arith.constant 0 : i32
    return %c0_i32, %arg1 : i32, i32
  }
  func.func @transform_6(%arg0: i32, %arg1: i32) -> (i32, i32) {
    %c0_i32 = arith.constant 0 : i32
    %c0_i32_0 = arith.constant 0 : i32
    return %arg1, %c0_i32 : i32, i32
  }
  func.func @transform_7(%arg0: i32, %arg1: i32) -> (i32, i32) {
    %c0_i32 = arith.constant 0 : i32
    %c0_i32_0 = arith.constant 0 : i32
    return %arg0, %c0_i32 : i32, i32
  }
  func.func @transform_8(%arg0: i32, %arg1: i32) -> (i32, i32) {
    %c0_i32 = arith.constant 0 : i32
    return %arg0, %arg1 : i32, i32
  }
  func.func @transform_9(%arg0: i32, %arg1: i32) -> (i32, i32, i32) {
    %c0_i32 = arith.constant 0 : i32
    %c0_i32_0 = arith.constant 0 : i32
    %c0_i32_1 = arith.constant 0 : i32
    return %arg0, %c0_i32, %c0_i32_0 : i32, i32, i32
  }
  func.func @transform_10(%arg0: i32, %arg1: i32) -> (i32, i32, i32) {
    %c0_i32 = arith.constant 0 : i32
    %c0_i32_0 = arith.constant 0 : i32
    %c0_i32_1 = arith.constant 0 : i32
    return %arg0, %c0_i32, %c0_i32_0 : i32, i32, i32
  }
  func.func @transform_11(%arg0: i32, %arg1: i32) -> (i32, i32, i32) {
    %c0_i32 = arith.constant 0 : i32
    %c0_i32_0 = arith.constant 0 : i32
    %c0_i32_1 = arith.constant 0 : i32
    return %arg0, %c0_i32, %c0_i32_0 : i32, i32, i32
  }
  func.func @transform_12(%arg0: i32, %arg1: i32) -> (i32, i32, i32) {
    %c0_i32 = arith.constant 0 : i32
    %c0_i32_0 = arith.constant 0 : i32
    %c0_i32_1 = arith.constant 0 : i32
    return %arg0, %c0_i32, %c0_i32_0 : i32, i32, i32
  }
  func.func @transform_13(%arg0: i32, %arg1: i32) -> (i32, i32, i32) {
    %c0_i32 = arith.constant 0 : i32
    %c0_i32_0 = arith.constant 0 : i32
    %c0_i32_1 = arith.constant 0 : i32
    return %arg0, %c0_i32, %c0_i32_0 : i32, i32, i32
  }
}

</mosaic_0001>

<llo_original>
// kernel: tpu_custom_call.1
$region0: #{tpu_custom_call.1}
  #allocation0 [shape = 'u32[]', space=smem, size = 0x4, offset = 0x4, fixed_abs, tag = 'smem constant byte address 0x4 - core index']
  #allocation1 [shape = 'u32[72,128]{1,0:T(1,128)}', space=vmem, size = 0x9000, scoped, tag = 'internal scratch']
  %s0 = inlined_call_operand.hbm [shape: f32[48,128], index: 0, kind: input, shape index: {}]
  %s1 = inlined_call_operand.hbm [shape: bf16[128,768], index: 1, kind: input, shape index: {}]
  %s2 = inlined_call_operand.hbm [shape: f32[1,768], index: 2, kind: input, shape index: {}]
  %s3 = inlined_call_operand.vmem [shape: f32[1,128], index: 3, kind: input, shape index: {}]
  %s4 = inlined_call_operand.hbm [shape: f32[1,768], index: 4, kind: input, shape index: {}]
  %s5 = inlined_call_operand.hbm [shape: f32[1,768], index: 5, kind: input, shape index: {}]
  %s6 = inlined_call_operand.hbm [shape: bf16[768,128], index: 6, kind: input, shape index: {}]
  %s7 = inlined_call_operand.hbm [shape: f32[48,128], index: 7, kind: output, shape index: {0}]
  %s8 = inlined_call_operand.hbm [shape: f32[48,768], index: 8, kind: output, shape index: {1}]
  %s9 = inlined_call_operand.hbm [shape: f32[3,1,128], index: 9, kind: output, shape index: {2}]
  %s10 = inlined_call_operand.hbm [shape: f32[3,1,128], index: 10, kind: output, shape index: {3}]
  %s11 = inlined_call_operand.hbm [shape: f32[3,1,128], index: 11, kind: output, shape index: {4}]
  %s12 = inlined_call_operand.hbm [shape: f32[3,1,128], index: 12, kind: output, shape index: {5}]
  %s13 = inlined_call_operand.hbm [shape: f32[3,1,128], index: 13, kind: output, shape index: {6}]
  %14 = xla_tuple %s7, %s8, %s9, %s10, %s11, %s12, %s13
  %s15 = sld [smem:[#allocation0]]
  $region145: #{tpu_custom_call.1} parent=0
    _
  %s17 = ssub.s32 1, %s15
  %s18 = scalar_select 0, %s17, %s15
  $region1: #{tpu_custom_call.1} parent=0
    #allocation2 [shape = 'u8[16384]{0}', space=vmem, size = 0x4000, scoped, tag = 'input window, operand 0']
    #allocation3 [shape = 's32[2]{0}', space=sflag, size = 0x8, scoped, tag = 'scoped memory for tpu_custom_call.1']
    #allocation4 [shape = 's32[2]{0}', space=sflag, size = 0x8, scoped, tag = 'scoped memory for tpu_custom_call.1']
    #allocation5 [shape = 'u8[196608]{0}', space=vmem, size = 0x30000, scoped, tag = 'input window, operand 1']
    #allocation6 [shape = 's32[2]{0}', space=sflag, size = 0x8, scoped, tag = 'scoped memory for tpu_custom_call.1']
    #allocation7 [shape = 'u8[3072]{0}', space=vmem, size = 0xc00, scoped, tag = 'input window, operand 2']
    #allocation8 [shape = 'u8[3072]{0}', space=vmem, size = 0xc00, scoped, tag = 'input window, operand 4']
    #allocation9 [shape = 's32[2]{0}', space=sflag, size = 0x8, scoped, tag = 'scoped memory for tpu_custom_call.1']
    #allocation10 [shape = 'u8[3072]{0}', space=vmem, size = 0xc00, scoped, tag = 'input window, operand 5']
    #allocation11 [shape = 'u8[196608]{0}', space=vmem, size = 0x30000, scoped, tag = 'input window, operand 6']
    #allocation12 [shape = 's32[2]{0}', space=sflag, size = 0x8, scoped, tag = 'scoped memory for tpu_custom_call.1']
    #allocation13 [shape = 'u8[16384]{0}', space=vmem, size = 0x4000, scoped, tag = 'output window, operand 0']
    #allocation14 [shape = 'u8[49152]{0}', space=vmem, size = 0xc000, scoped, tag = 'output window, operand 1']
    #allocation15 [shape = 's32[2]{0}', space=sflag, size = 0x8, scoped, tag = 'scoped memory for tpu_custom_call.1']
    #allocation16 [shape = 'u8[1024]{0}', space=vmem, size = 0x400, scoped, tag = 'output window, operand 2']
    #allocation17 [shape = 'u8[1024]{0}', space=vmem, size = 0x400, scoped, tag = 'output window, operand 3']
    #allocation18 [shape = 's32[2]{0}', space=sflag, size = 0x8, scoped, tag = 'scoped memory for tpu_custom_call.1']
    #allocation19 [shape = 'u8[1024]{0}', space=vmem, size = 0x400, scoped, tag = 'output window, operand 4']
    #allocation20 [shape = 'u8[1024]{0}', space=vmem, size = 0x400, scoped, tag = 'output window, operand 5']
    #allocation21 [shape = 's32[2]{0}', space=sflag, size = 0x8, scoped, tag = 'scoped memory for tpu_custom_call.1']
    #allocation22 [shape = 'u8[1024]{0}', space=vmem, size = 0x400, scoped, tag = 'output window, operand 6']
    %19 = vsyncpa [#allocation3], 0
    %s20 = scalar_lea.sflag [#allocation3], 1
    %21 = vsyncpa %s20, 0
    %22 = vsyncpa [#allocation6], 0
    %s23 = scalar_lea.sflag [#allocation6], 1
    %24 = vsyncpa %s23, 0
    %25 = vsyncpa [#allocation9], 0
    %s26 = scalar_lea.sflag [#allocation9], 1
    %27 = vsyncpa %s26, 0
    %28 = vsyncpa [#allocation12], 0
    %s29 = scalar_lea.sflag [#allocation12], 1
    %30 = vsyncpa %s29, 0
    %31 = vsyncpa [#allocation4], 0
    %s32 = scalar_lea.sflag [#allocation4], 1
    %33 = vsyncpa %s32, 0
    %34 = vsyncpa [#allocation15], 0
    %s35 = scalar_lea.sflag [#allocation15], 1
    %36 = vsyncpa %s35, 0
    %37 = vsyncpa [#allocation18], 0
    %s38 = scalar_lea.sflag [#allocation18], 1
    %39 = vsyncpa %s38, 0
    %40 = vsyncpa [#allocation21], 0
    %s41 = scalar_lea.sflag [#allocation21], 1
    %42 = vsyncpa %s41, 0
    loop: start=0, step=1, limit=8
    $region2: #{tpu_custom_call.1} parent=1 // loop_pre_header
      _
    $region3: #{tpu_custom_call.1} parent=1 // loop_header
      %s44 = sphi 0, %s48
      %p45 = scmp.ge.s32.totalorder %s44, 8
      %s51 = sphi 0, %s63
      %s52 = sphi 0, %s59
      %s53 = sphi 0, %s51
      %s54 = sphi 0, %s52
      %s55 = sphi 0, %s53
      %s56 = sphi 0, %s54
      %s66 = sphi 0, %s68
      %s69 = sphi 0, %s66
      %s70 = sphi 0, %s69
      %s86 = sphi 0, %s70
      %s92 = sphi 0, %s94
      %s95 = sphi 0, %s92
      %s96 = sphi 0, %s95
      %s112 = sphi 0, %s96
      %s118 = sphi 0, %s120
      %s121 = sphi 0, %s118
      %s122 = sphi 0, %s121
      %s138 = sphi 0, %s122
      %s142 = sphi 0, %s142
      %s144 = sphi 0, %s142
      %s145 = sphi 0, %s144
      %s159 = sphi 0, %s145
      %s165 = sphi 0, %s167
      %s168 = sphi 0, %s165
      %s169 = sphi 0, %s168
      %s185 = sphi 0, %s169
      %s191 = sphi 0, %s193
      %s194 = sphi 0, %s191
      %s195 = sphi 0, %s194
      %s211 = sphi 0, %s195
      %s217 = sphi 0, %s219
      %s220 = sphi 0, %s217
      %s221 = sphi 0, %s220
      %s237 = sphi 0, %s221
      %s243 = sphi 0, %s245
      %s246 = sphi 0, %s243
      %s247 = sphi 0, %s246
      %s263 = sphi 0, %s247
      %s271 = sphi 0, %s273
      %s274 = sphi 0, %s271
      %s275 = sphi 0, %s274
      %s291 = sphi 0, %s275
      %s297 = sphi 0, %s299
      %s300 = sphi 0, %s297
      %s301 = sphi 0, %s300
      %s317 = sphi 0, %s301
      %s323 = sphi 0, %s325
      %s326 = sphi 0, %s323
      %s327 = sphi 0, %s326
      %s343 = sphi 0, %s327
      %s349 = sphi 0, %s351
      %s352 = sphi 0, %s349
      %s353 = sphi 0, %s352
      %s369 = sphi 0, %s353
      %s375 = sphi 0, %s377
      %s378 = sphi 0, %s375
      %s379 = sphi 0, %s378
      %s395 = sphi 0, %s379
      %s401 = sphi 0, %s403
      %s404 = sphi 0, %s401
      %s405 = sphi 0, %s404
      %s421 = sphi 0, %s405
    $region4: #{tpu_custom_call.1} parent=1 // loop_header_branch
      %47 = sbr.rel (%p45) target = $region8
    $region5: #{tpu_custom_call.1} parent=1 // loop_body
      %s49 = ssub.s32 %s44, 1
      %s50 = ssub.s32 %s44, 2
      %s57 = sadd.s32 1, %s52
      %p58 = scmp.ge.s32.totalorder %s57, 2
      %s59 = scalar_select %p58, 0, %s57
      %s60 = sadd.s32 1, %s51
      %s61 = scalar_select %p58, %s60, %s51
      %p62 = scmp.ge.s32.totalorder %s61, 3
      %s63 = scalar_select %p62, 0, %s61
      %s64 = ssub.s32 %s51, %s63
      %p65 = scmp.eq.s32.totalorder %s64, 0
      %s67 = sadd.s32 %s66, 1
      %s68 = scalar_select %p65, %s66, %s67
      %p71 = pneg %p65
      %p72 = scmp.eq.s32.totalorder %s44, 5
      %p73 = por %p71, %p72
      %p74 = scmp.ne.s32.totalorder %s66, %s69
      %p75 = scmp.eq.s32.totalorder %s44, 0
      %p76 = por %p74, %p75
      %p77 = scmp.ne.s32.totalorder %s66, %s69
      %p78 = scmp.eq.s32.totalorder %s49, 5
      %p79 = por %p77, %p78
      %p80 = scmp.ne.s32.totalorder %s69, %s70
      %p81 = scmp.eq.s32.totalorder %s49, 0
      %p82 = por %p80, %p81
      %p83 = scmp.ne.s32.totalorder %s69, %s70
      %p84 = scmp.eq.s32.totalorder %s50, 5
      %p85 = por %p83, %p84
      %p87 = scmp.ne.s32.totalorder %s70, %s86
      %p88 = scmp.eq.s32.totalorder %s50, 0
      %p89 = por %p87, %p88
      %s90 = ssub.s32 %s52, %s59
      %p91 = scmp.eq.s32.totalorder %s90, 0
      %s93 = sadd.s32 %s92, 1
      %s94 = scalar_select %p91, %s92, %s93
      %p97 = pneg %p91
      %p98 = scmp.eq.s32.totalorder %s44, 5
      %p99 = por %p97, %p98
      %p100 = scmp.ne.s32.totalorder %s92, %s95
      %p101 = scmp.eq.s32.totalorder %s44, 0
      %p102 = por %p100, %p101
      %p103 = scmp.ne.s32.totalorder %s92, %s95
      %p104 = scmp.eq.s32.totalorder %s49, 5
      %p105 = por %p103, %p104
      %p106 = scmp.ne.s32.totalorder %s95, %s96
      %p107 = scmp.eq.s32.totalorder %s49, 0
      %p108 = por %p106, %p107
      %p109 = scmp.ne.s32.totalorder %s95, %s96
      %p110 = scmp.eq.s32.totalorder %s50, 5
      %p111 = por %p109, %p110
      %p113 = scmp.ne.s32.totalorder %s96, %s112
      %p114 = scmp.eq.s32.totalorder %s50, 0
      %p115 = por %p113, %p114
      %s116 = ssub.s32 %s52, %s59
      %p117 = scmp.eq.s32.totalorder %s116, 0
      %s119 = sadd.s32 %s118, 1
      %s120 = scalar_select %p117, %s118, %s119
      %p123 = pneg %p117
      %p124 = scmp.eq.s32.totalorder %s44, 5
      %p125 = por %p123, %p124
      %p126 = scmp.ne.s32.totalorder %s118, %s121
      %p127 = scmp.eq.s32.totalorder %s44, 0
      %p128 = por %p126, %p127
      %p129 = scmp.ne.s32.totalorder %s118, %s121
      %p130 = scmp.eq.s32.totalorder %s49, 5
      %p131 = por %p129, %p130
      %p132 = scmp.ne.s32.totalorder %s121, %s122
      %p133 = scmp.eq.s32.totalorder %s49, 0
      %p134 = por %p132, %p133
      %p135 = scmp.ne.s32.totalorder %s121, %s122
      %p136 = scmp.eq.s32.totalorder %s50, 5
      %p137 = por %p135, %p136
      %p139 = scmp.ne.s32.totalorder %s122, %s138
      %p140 = scmp.eq.s32.totalorder %s50, 0
      %p141 = por %p139, %p140
      %s143 = sadd.s32 %s142, 1
      %p146 = scmp.eq.s32.totalorder %s44, 5
      %p147 = scmp.ne.s32.totalorder %s142, %s144
      %p148 = scmp.eq.s32.totalorder %s44, 0
      %p149 = por %p147, %p148
      %p150 = scmp.ne.s32.totalorder %s142, %s144
      %p151 = scmp.eq.s32.totalorder %s49, 5
      %p152 = por %p150, %p151
      %p153 = scmp.ne.s32.totalorder %s144, %s145
      %p154 = scmp.eq.s32.totalorder %s49, 0
      %p155 = por %p153, %p154
      %p156 = scmp.ne.s32.totalorder %s144, %s145
      %p157 = scmp.eq.s32.totalorder %s50, 5
      %p158 = por %p156, %p157
      %p160 = scmp.ne.s32.totalorder %s145, %s159
      %p161 = scmp.eq.s32.totalorder %s50, 0
      %p162 = por %p160, %p161
      %s163 = ssub.s32 %s52, %s59
      %p164 = scmp.eq.s32.totalorder %s163, 0
      %s166 = sadd.s32 %s165, 1
      %s167 = scalar_select %p164, %s165, %s166
      %p170 = pneg %p164
      %p171 = scmp.eq.s32.totalorder %s44, 5
      %p172 = por %p170, %p171
      %p173 = scmp.ne.s32.totalorder %s165, %s168
      %p174 = scmp.eq.s32.totalorder %s44, 0
      %p175 = por %p173, %p174
      %p176 = scmp.ne.s32.totalorder %s165, %s168
      %p177 = scmp.eq.s32.totalorder %s49, 5
      %p178 = por %p176, %p177
      %p179 = scmp.ne.s32.totalorder %s168, %s169
      %p180 = scmp.eq.s32.totalorder %s49, 0
      %p181 = por %p179, %p180
      %p182 = scmp.ne.s32.totalorder %s168, %s169
      %p183 = scmp.eq.s32.totalorder %s50, 5
      %p184 = por %p182, %p183
      %p186 = scmp.ne.s32.totalorder %s169, %s185
      %p187 = scmp.eq.s32.totalorder %s50, 0
      %p188 = por %p186, %p187
      %s189 = ssub.s32 %s52, %s59
      %p190 = scmp.eq.s32.totalorder %s189, 0
      %s192 = sadd.s32 %s191, 1
      %s193 = scalar_select %p190, %s191, %s192
      %p196 = pneg %p190
      %p197 = scmp.eq.s32.totalorder %s44, 5
      %p198 = por %p196, %p197
      %p199 = scmp.ne.s32.totalorder %s191, %s194
      %p200 = scmp.eq.s32.totalorder %s44, 0
      %p201 = por %p199, %p200
      %p202 = scmp.ne.s32.totalorder %s191, %s194
      %p203 = scmp.eq.s32.totalorder %s49, 5
      %p204 = por %p202, %p203
      %p205 = scmp.ne.s32.totalorder %s194, %s195
      %p206 = scmp.eq.s32.totalorder %s49, 0
      %p207 = por %p205, %p206
      %p208 = scmp.ne.s32.totalorder %s194, %s195
      %p209 = scmp.eq.s32.totalorder %s50, 5
      %p210 = por %p208, %p209
      %p212 = scmp.ne.s32.totalorder %s195, %s211
      %p213 = scmp.eq.s32.totalorder %s50, 0
      %p214 = por %p212, %p213
      %s215 = ssub.s32 %s52, %s59
      %p216 = scmp.eq.s32.totalorder %s215, 0
      %s218 = sadd.s32 %s217, 1
      %s219 = scalar_select %p216, %s217, %s218
      %p222 = pneg %p216
      %p223 = scmp.eq.s32.totalorder %s44, 5
      %p224 = por %p222, %p223
      %p225 = scmp.ne.s32.totalorder %s217, %s220
      %p226 = scmp.eq.s32.totalorder %s44, 0
      %p227 = por %p225, %p226
      %p228 = scmp.ne.s32.totalorder %s217, %s220
      %p229 = scmp.eq.s32.totalorder %s49, 5
      %p230 = por %p228, %p229
      %p231 = scmp.ne.s32.totalorder %s220, %s221
      %p232 = scmp.eq.s32.totalorder %s49, 0
      %p233 = por %p231, %p232
      %p234 = scmp.ne.s32.totalorder %s220, %s221
      %p235 = scmp.eq.s32.totalorder %s50, 5
      %p236 = por %p234, %p235
      %p238 = scmp.ne.s32.totalorder %s221, %s237
      %p239 = scmp.eq.s32.totalorder %s50, 0
      %p240 = por %p238, %p239
      %s241 = ssub.s32 %s51, %s63
      %p242 = scmp.eq.s32.totalorder %s241, 0
      %s244 = sadd.s32 %s243, 1
      %s245 = scalar_select %p242, %s243, %s244
      %p248 = pneg %p242
      %p249 = scmp.eq.s32.totalorder %s44, 5
      %p250 = por %p248, %p249
      %p251 = scmp.ne.s32.totalorder %s243, %s246
      %p252 = scmp.eq.s32.totalorder %s44, 0
      %p253 = por %p251, %p252
      %p254 = scmp.ne.s32.totalorder %s243, %s246
      %p255 = scmp.eq.s32.totalorder %s49, 5
      %p256 = por %p254, %p255
      %p257 = scmp.ne.s32.totalorder %s246, %s247
      %p258 = scmp.eq.s32.totalorder %s49, 0
      %p259 = por %p257, %p258
      %p260 = scmp.ne.s32.totalorder %s246, %s247
      %p261 = scmp.eq.s32.totalorder %s50, 5
      %p262 = por %p260, %p261
      %p264 = scmp.ne.s32.totalorder %s247, %s263
      %p265 = scmp.eq.s32.totalorder %s50, 0
      %p266 = por %p264, %p265
      %s267 = ssub.s32 %s51, %s63
      %s268 = ssub.s32 %s52, %s59
      %s269 = sor.u32 %s267, %s268
      %p270 = scmp.eq.s32.totalorder %s269, 0
      %s272 = sadd.s32 %s271, 1
      %s273 = scalar_select %p270, %s271, %s272
      %p276 = pneg %p270
      %p277 = scmp.eq.s32.totalorder %s44, 5
      %p278 = por %p276, %p277
      %p279 = scmp.ne.s32.totalorder %s271, %s274
      %p280 = scmp.eq.s32.totalorder %s44, 0
      %p281 = por %p279, %p280
      %p282 = scmp.ne.s32.totalorder %s271, %s274
      %p283 = scmp.eq.s32.totalorder %s49, 5
      %p284 = por %p282, %p283
      %p285 = scmp.ne.s32.totalorder %s274, %s275
      %p286 = scmp.eq.s32.totalorder %s49, 0
      %p287 = por %p285, %p286
      %p288 = scmp.ne.s32.totalorder %s274, %s275
      %p289 = scmp.eq.s32.totalorder %s50, 5
      %p290 = por %p288, %p289
      %p292 = scmp.ne.s32.totalorder %s275, %s291
      %p293 = scmp.eq.s32.totalorder %s50, 0
      %p294 = por %p292, %p293
      %s295 = ssub.s32 %s51, %s63
      %p296 = scmp.eq.s32.totalorder %s295, 0
      %s298 = sadd.s32 %s297, 1
      %s299 = scalar_select %p296, %s297, %s298
      %p302 = pneg %p296
      %p303 = scmp.eq.s32.totalorder %s44, 5
      %p304 = por %p302, %p303
      %p305 = scmp.ne.s32.totalorder %s297, %s300
      %p306 = scmp.eq.s32.totalorder %s44, 0
      %p307 = por %p305, %p306
      %p308 = scmp.ne.s32.totalorder %s297, %s300
      %p309 = scmp.eq.s32.totalorder %s49, 5
      %p310 = por %p308, %p309
      %p311 = scmp.ne.s32.totalorder %s300, %s301
      %p312 = scmp.eq.s32.totalorder %s49, 0
      %p313 = por %p311, %p312
      %p314 = scmp.ne.s32.totalorder %s300, %s301
      %p315 = scmp.eq.s32.totalorder %s50, 5
      %p316 = por %p314, %p315
      %p318 = scmp.ne.s32.totalorder %s301, %s317
      %p319 = scmp.eq.s32.totalorder %s50, 0
      %p320 = por %p318, %p319
      %s321 = ssub.s32 %s51, %s63
      %p322 = scmp.eq.s32.totalorder %s321, 0
      %s324 = sadd.s32 %s323, 1
      %s325 = scalar_select %p322, %s323, %s324
      %p328 = pneg %p322
      %p329 = scmp.eq.s32.totalorder %s44, 5
      %p330 = por %p328, %p329
      %p331 = scmp.ne.s32.totalorder %s323, %s326
      %p332 = scmp.eq.s32.totalorder %s44, 0
      %p333 = por %p331, %p332
      %p334 = scmp.ne.s32.totalorder %s323, %s326
      %p335 = scmp.eq.s32.totalorder %s49, 5
      %p336 = por %p334, %p335
      %p337 = scmp.ne.s32.totalorder %s326, %s327
      %p338 = scmp.eq.s32.totalorder %s49, 0
      %p339 = por %p337, %p338
      %p340 = scmp.ne.s32.totalorder %s326, %s327
      %p341 = scmp.eq.s32.totalorder %s50, 5
      %p342 = por %p340, %p341
      %p344 = scmp.ne.s32.totalorder %s327, %s343
      %p345 = scmp.eq.s32.totalorder %s50, 0
      %p346 = por %p344, %p345
      %s347 = ssub.s32 %s51, %s63
      %p348 = scmp.eq.s32.totalorder %s347, 0
      %s350 = sadd.s32 %s349, 1
      %s351 = scalar_select %p348, %s349, %s350
      %p354 = pneg %p348
      %p355 = scmp.eq.s32.totalorder %s44, 5
      %p356 = por %p354, %p355
      %p357 = scmp.ne.s32.totalorder %s349, %s352
      %p358 = scmp.eq.s32.totalorder %s44, 0
      %p359 = por %p357, %p358
      %p360 = scmp.ne.s32.totalorder %s349, %s352
      %p361 = scmp.eq.s32.totalorder %s49, 5
      %p362 = por %p360, %p361
      %p363 = scmp.ne.s32.totalorder %s352, %s353
      %p364 = scmp.eq.s32.totalorder %s49, 0
      %p365 = por %p363, %p364
      %p366 = scmp.ne.s32.totalorder %s352, %s353
      %p367 = scmp.eq.s32.totalorder %s50, 5
      %p368 = por %p366, %p367
      %p370 = scmp.ne.s32.totalorder %s353, %s369
      %p371 = scmp.eq.s32.totalorder %s50, 0
      %p372 = por %p370, %p371
      %s373 = ssub.s32 %s51, %s63
      %p374 = scmp.eq.s32.totalorder %s373, 0
      %s376 = sadd.s32 %s375, 1
      %s377 = scalar_select %p374, %s375, %s376
      %p380 = pneg %p374
      %p381 = scmp.eq.s32.totalorder %s44, 5
      %p382 = por %p380, %p381
      %p383 = scmp.ne.s32.totalorder %s375, %s378
      %p384 = scmp.eq.s32.totalorder %s44, 0
      %p385 = por %p383, %p384
      %p386 = scmp.ne.s32.totalorder %s375, %s378
      %p387 = scmp.eq.s32.totalorder %s49, 5
      %p388 = por %p386, %p387
      %p389 = scmp.ne.s32.totalorder %s378, %s379
      %p390 = scmp.eq.s32.totalorder %s49, 0
      %p391 = por %p389, %p390
      %p392 = scmp.ne.s32.totalorder %s378, %s379
      %p393 = scmp.eq.s32.totalorder %s50, 5
      %p394 = por %p392, %p393
      %p396 = scmp.ne.s32.totalorder %s379, %s395
      %p397 = scmp.eq.s32.totalorder %s50, 0
      %p398 = por %p396, %p397
      %s399 = ssub.s32 %s51, %s63
      %p400 = scmp.eq.s32.totalorder %s399, 0
      %s402 = sadd.s32 %s401, 1
      %s403 = scalar_select %p400, %s401, %s402
      %p406 = pneg %p400
      %p407 = scmp.eq.s32.totalorder %s44, 5
      %p408 = por %p406, %p407
      %p409 = scmp.ne.s32.totalorder %s401, %s404
      %p410 = scmp.eq.s32.totalorder %s44, 0
      %p411 = por %p409, %p410
      %p412 = scmp.ne.s32.totalorder %s401, %s404
      %p413 = scmp.eq.s32.totalorder %s49, 5
      %p414 = por %p412, %p413
      %p415 = scmp.ne.s32.totalorder %s404, %s405
      %p416 = scmp.eq.s32.totalorder %s49, 0
      %p417 = por %p415, %p416
      %p418 = scmp.ne.s32.totalorder %s404, %s405
      %p419 = scmp.eq.s32.totalorder %s50, 5
      %p420 = por %p418, %p419
      %p422 = scmp.ne.s32.totalorder %s405, %s421
      %p423 = scmp.eq.s32.totalorder %s50, 0
      %p424 = por %p422, %p423
      %p425 = scmp.le.s32.totalorder 1, %s44
      %p426 = scmp.lt.s32.totalorder %s44, 7
      %p427 = pnand %p425, %p426
      %p428 = pneg %p427
      // Predicated region
      $region9: #{tpu_custom_call.1} parent=5 // pred_check
        _
      $region10: #{tpu_custom_call.1} parent=5 // pred_check_branch
        %430 = sbr.rel (%p427) target = $region12
      $region11: #{tpu_custom_call.1} parent=5 // pred_region
        %s431 = ssub.s32 %s44, 1
        // Predicated region
        $region13: #{tpu_custom_call.1} parent=11 // pred_check
          %p432 = pneg %p155
        $region14: #{tpu_custom_call.1} parent=11 // pred_check_branch
          %434 = sbr.rel (%p432) target = $region16
        $region15: #{tpu_custom_call.1} parent=11 // pred_region
          _
        $region16: #{tpu_custom_call.1} parent=11 // pred_fallthru
          _
      $region12: #{tpu_custom_call.1} parent=5 // pred_fallthru
        _
      %p435 = scmp.lt.s32.totalorder %s44, 6
      // Predicated region
      $region17: #{tpu_custom_call.1} parent=5 // pred_check
        %p436 = pneg %p435
      $region18: #{tpu_custom_call.1} parent=5 // pred_check_branch
        %438 = sbr.rel (%p436) target = $region20
      $region19: #{tpu_custom_call.1} parent=5 // pred_region
        // Predicated region
        $region21: #{tpu_custom_call.1} parent=19 // pred_check
          %p439 = pneg %p76
        $region22: #{tpu_custom_call.1} parent=19 // pred_check_branch
          %441 = sbr.rel (%p439) target = $region24
        $region23: #{tpu_custom_call.1} parent=19 // pred_region
          %s442 = sand.u32 %s66, 1
          %s443 = scalar_lea.sflag [#allocation3], %s442
          %s444 = sand.u32 %s66, 1
          %s445 = smul.addr %s444, 16
          %s446 = scalar_lea.vmem [#allocation2], %s445
          %s447 = smul.u32 2, %s51
          %449 = vsyncadd %s443, 0
          %s450 = smul.addr %s447, 8
          %s451 = scalar_lea.hbm %s0, %s450
          %s452 = sshll.u32 %s451, 4
          %s453 = int_to_ptr.hbm [resolvable:$true] %s452
          %s454 = sshll.u32 %s446, 4
          %s455 = int_to_ptr.vmem [resolvable:$true] %s454
          %460 = dma.hbm_to_vmem [thread:$0]  %s453, 256, %s455, %s443, 128, 128, 8
        $region24: #{tpu_custom_call.1} parent=19 // pred_fallthru
          _
        // Predicated region
        $region25: #{tpu_custom_call.1} parent=19 // pred_check
          %p461 = pneg %p102
        $region26: #{tpu_custom_call.1} parent=19 // pred_check_branch
          %463 = sbr.rel (%p461) target = $region28
        $region27: #{tpu_custom_call.1} parent=19 // pred_region
          %s464 = sand.u32 %s44, 1
          %s465 = scalar_lea.sflag [#allocation6], %s464
          %s466 = sand.u32 %s92, 1
          %s467 = smul.addr %s466, 192
          %s468 = scalar_lea.vmem [#allocation5], %s467
          %s469 = smul.u32 3, %s52
          %471 = vsyncadd %s465, 0
          %s472 = smul.addr %s469, 4
          %s473 = scalar_lea.hbm %s1, %s472
          %s474 = sshll.u32 %s473, 4
          %s475 = int_to_ptr.hbm [resolvable:$true] %s474
          %s476 = sshll.u32 %s468, 4
          %s477 = int_to_ptr.vmem [resolvable:$true] %s476
          %482 = dma.hbm_to_vmem [thread:$0]  %s475, 3072, %s477, %s465, 384, 192, 12
        $region28: #{tpu_custom_call.1} parent=19 // pred_fallthru
          _
        // Predicated region
        $region29: #{tpu_custom_call.1} parent=19 // pred_check
          %p483 = pneg %p128
        $region30: #{tpu_custom_call.1} parent=19 // pred_check_branch
          %485 = sbr.rel (%p483) target = $region32
        $region31: #{tpu_custom_call.1} parent=19 // pred_region
          %s486 = sand.u32 %s44, 1
          %s487 = scalar_lea.sflag [#allocation6], %s486
          %s488 = sand.u32 %s118, 1
          %s489 = smul.addr %s488, 3
          %s490 = scalar_lea.vmem [#allocation7], %s489
          %s491 = smul.u32 3, %s52
          %493 = vsyncadd %s487, 0
          %s494 = scalar_lea.hbm %s2, %s491
          %s496 = sshll.u32 %s494, 4
          %s497 = int_to_ptr.hbm [resolvable:$true] %s496
          %s498 = sshll.u32 %s490, 4
          %s499 = int_to_ptr.vmem [resolvable:$true] %s498
          %501 = dma.hbm_to_vmem [thread:$0]  %s497, 48, %s499, %s487
        $region32: #{tpu_custom_call.1} parent=19 // pred_fallthru
          _
        // Predicated region
        $region33: #{tpu_custom_call.1} parent=19 // pred_check
          %p502 = pneg %p175
        $region34: #{tpu_custom_call.1} parent=19 // pred_check_branch
          %504 = sbr.rel (%p502) target = $region36
        $region35: #{tpu_custom_call.1} parent=19 // pred_region
          %s505 = sand.u32 %s44, 1
          %s506 = scalar_lea.sflag [#allocation9], %s505
          %s507 = sand.u32 %s165, 1
          %s508 = smul.addr %s507, 3
          %s509 = scalar_lea.vmem [#allocation8], %s508
          %s510 = smul.u32 3, %s52
          %512 = vsyncadd %s506, 0
          %s513 = scalar_lea.hbm %s4, %s510
          %s515 = sshll.u32 %s513, 4
          %s516 = int_to_ptr.hbm [resolvable:$true] %s515
          %s517 = sshll.u32 %s509, 4
          %s518 = int_to_ptr.vmem [resolvable:$true] %s517
          %520 = dma.hbm_to_vmem [thread:$0]  %s516, 48, %s518, %s506
        $region36: #{tpu_custom_call.1} parent=19 // pred_fallthru
          _
        // Predicated region
        $region37: #{tpu_custom_call.1} parent=19 // pred_check
          %p521 = pneg %p201
        $region38: #{tpu_custom_call.1} parent=19 // pred_check_branch
          %523 = sbr.rel (%p521) target = $region40
        $region39: #{tpu_custom_call.1} parent=19 // pred_region
          %s524 = sand.u32 %s44, 1
          %s525 = scalar_lea.sflag [#allocation9], %s524
          %s526 = sand.u32 %s191, 1
          %s527 = smul.addr %s526, 3
          %s528 = scalar_lea.vmem [#allocation10], %s527
          %s529 = smul.u32 3, %s52
          %531 = vsyncadd %s525, 0
          %s532 = scalar_lea.hbm %s5, %s529
          %s534 = sshll.u32 %s532, 4
          %s535 = int_to_ptr.hbm [resolvable:$true] %s534
          %s536 = sshll.u32 %s528, 4
          %s537 = int_to_ptr.vmem [resolvable:$true] %s536
          %539 = dma.hbm_to_vmem [thread:$0]  %s535, 48, %s537, %s525
        $region40: #{tpu_custom_call.1} parent=19 // pred_fallthru
          _
        // Predicated region
        $region41: #{tpu_custom_call.1} parent=19 // pred_check
          %p540 = pneg %p227
        $region42: #{tpu_custom_call.1} parent=19 // pred_check_branch
          %542 = sbr.rel (%p540) target = $region44
        $region43: #{tpu_custom_call.1} parent=19 // pred_region
          %s543 = sand.u32 %s217, 1
          %s544 = scalar_lea.sflag [#allocation12], %s543
          %s545 = sand.u32 %s217, 1
          %s546 = smul.addr %s545, 192
          %s547 = scalar_lea.vmem [#allocation11], %s546
          %s548 = smul.u32 48, %s52
          %550 = vsyncadd %s544, 0
          %s551 = smul.addr %s548, 4
          %s552 = scalar_lea.hbm %s6, %s551
          %s553 = sshll.u32 %s552, 4
          %s554 = int_to_ptr.hbm [resolvable:$true] %s553
          %s555 = sshll.u32 %s547, 4
          %s556 = int_to_ptr.vmem [resolvable:$true] %s555
          %561 = dma.hbm_to_vmem [thread:$0]  %s554, 3072, %s556, %s544, 64, 64, 4
        $region44: #{tpu_custom_call.1} parent=19 // pred_fallthru
          _
      $region20: #{tpu_custom_call.1} parent=5 // pred_fallthru
        _
      %p562 = scmp.le.s32.totalorder 1, %s44
      %p563 = scmp.lt.s32.totalorder %s44, 7
      %p564 = pnand %p562, %p563
      %p565 = pneg %p564
      // Predicated region
      $region45: #{tpu_custom_call.1} parent=5 // pred_check
        _
      $region46: #{tpu_custom_call.1} parent=5 // pred_check_branch
        %567 = sbr.rel (%p564) target = $region48
      $region47: #{tpu_custom_call.1} parent=5 // pred_region
        %s568 = ssub.s32 %s44, 1
        %s569 = sand.u32 %s69, 1
        %s570 = scalar_lea.sflag [#allocation3], %s569
        %s571 = sand.u32 %s69, 1
        %s572 = smul.addr %s571, 16
        %s573 = scalar_lea.vmem [#allocation2], %s572
        // Predicated region
        $region49: #{tpu_custom_call.1} parent=47 // pred_check
          %p574 = pneg %p82
        $region50: #{tpu_custom_call.1} parent=47 // pred_check_branch
          %576 = sbr.rel (%p574) target = $region52
        $region51: #{tpu_custom_call.1} parent=47 // pred_region
          %578 = dma.done %s570, 256
        $region52: #{tpu_custom_call.1} parent=47 // pred_fallthru
          _
        %s579 = sand.u32 %s49, 1
        %s580 = scalar_lea.sflag [#allocation6], %s579
        %s581 = sand.u32 %s95, 1
        %s582 = smul.addr %s581, 192
        %s583 = scalar_lea.vmem [#allocation5], %s582
        // Predicated region
        $region53: #{tpu_custom_call.1} parent=47 // pred_check
          %p584 = pneg %p108
        $region54: #{tpu_custom_call.1} parent=47 // pred_check_branch
          %586 = sbr.rel (%p584) target = $region56
        $region55: #{tpu_custom_call.1} parent=47 // pred_region
          %588 = dma.done %s580, 3072
        $region56: #{tpu_custom_call.1} parent=47 // pred_fallthru
          _
        %s589 = sand.u32 %s49, 1
        %s590 = scalar_lea.sflag [#allocation6], %s589
        %s591 = sand.u32 %s121, 1
        %s592 = smul.addr %s591, 3
        %s593 = scalar_lea.vmem [#allocation7], %s592
        // Predicated region
        $region57: #{tpu_custom_call.1} parent=47 // pred_check
          %p594 = pneg %p134
        $region58: #{tpu_custom_call.1} parent=47 // pred_check_branch
          %596 = sbr.rel (%p594) target = $region60
        $region59: #{tpu_custom_call.1} parent=47 // pred_region
          %598 = dma.done %s590, 48
        $region60: #{tpu_custom_call.1} parent=47 // pred_fallthru
          _
        %s599 = sand.u32 %s49, 1
        %s600 = scalar_lea.sflag [#allocation9], %s599
        %s601 = sand.u32 %s168, 1
        %s602 = smul.addr %s601, 3
        %s603 = scalar_lea.vmem [#allocation8], %s602
        // Predicated region
        $region61: #{tpu_custom_call.1} parent=47 // pred_check
          %p604 = pneg %p181
        $region62: #{tpu_custom_call.1} parent=47 // pred_check_branch
          %606 = sbr.rel (%p604) target = $region64
        $region63: #{tpu_custom_call.1} parent=47 // pred_region
          %608 = dma.done %s600, 48
        $region64: #{tpu_custom_call.1} parent=47 // pred_fallthru
          _
        %s609 = sand.u32 %s49, 1
        %s610 = scalar_lea.sflag [#allocation9], %s609
        %s611 = sand.u32 %s194, 1
        %s612 = smul.addr %s611, 3
        %s613 = scalar_lea.vmem [#allocation10], %s612
        // Predicated region
        $region65: #{tpu_custom_call.1} parent=47 // pred_check
          %p614 = pneg %p207
        $region66: #{tpu_custom_call.1} parent=47 // pred_check_branch
          %616 = sbr.rel (%p614) target = $region68
        $region67: #{tpu_custom_call.1} parent=47 // pred_region
          %618 = dma.done %s610, 48
        $region68: #{tpu_custom_call.1} parent=47 // pred_fallthru
          _
        %s619 = sand.u32 %s220, 1
        %s620 = scalar_lea.sflag [#allocation12], %s619
        %s621 = sand.u32 %s220, 1
        %s622 = smul.addr %s621, 192
        %s623 = scalar_lea.vmem [#allocation11], %s622
        // Predicated region
        $region69: #{tpu_custom_call.1} parent=47 // pred_check
          %p624 = pneg %p233
        $region70: #{tpu_custom_call.1} parent=47 // pred_check_branch
          %626 = sbr.rel (%p624) target = $region72
        $region71: #{tpu_custom_call.1} parent=47 // pred_region
          %628 = dma.done %s620, 3072
        $region72: #{tpu_custom_call.1} parent=47 // pred_fallthru
          _
        %s629 = sand.u32 %s69, 1
        %s630 = scalar_lea.sflag [#allocation3], %s629
        %s631 = sand.u32 %s69, 1
        %s632 = smul.addr %s631, 16
        %s633 = scalar_lea.vmem [#allocation2], %s632
        %p634 = pneg %p82
        %p635 = pneg %p79
        %s636 = sand.u32 %s49, 1
        %s637 = scalar_lea.sflag [#allocation6], %s636
        %s638 = sand.u32 %s95, 1
        %s639 = smul.addr %s638, 192
        %s640 = scalar_lea.vmem [#allocation5], %s639
        %p641 = pneg %p108
        %p642 = pneg %p105
        %s643 = sand.u32 %s49, 1
        %s644 = scalar_lea.sflag [#allocation6], %s643
        %s645 = sand.u32 %s121, 1
        %s646 = smul.addr %s645, 3
        %s647 = scalar_lea.vmem [#allocation7], %s646
        %p648 = pneg %p134
        %p649 = pneg %p131
        %p650 = pneg %p155
        %p651 = pneg %p152
        %s652 = sand.u32 %s49, 1
        %s653 = scalar_lea.sflag [#allocation9], %s652
        %s654 = sand.u32 %s168, 1
        %s655 = smul.addr %s654, 3
        %s656 = scalar_lea.vmem [#allocation8], %s655
        %p657 = pneg %p181
        %p658 = pneg %p178
        %s659 = sand.u32 %s49, 1
        %s660 = scalar_lea.sflag [#allocation9], %s659
        %s661 = sand.u32 %s194, 1
        %s662 = smul.addr %s661, 3
        %s663 = scalar_lea.vmem [#allocation10], %s662
        %p664 = pneg %p207
        %p665 = pneg %p204
        %s666 = sand.u32 %s220, 1
        %s667 = scalar_lea.sflag [#allocation12], %s666
        %s668 = sand.u32 %s220, 1
        %s669 = smul.addr %s668, 192
        %s670 = scalar_lea.vmem [#allocation11], %s669
        %p671 = pneg %p233
        %p672 = pneg %p230
        %p673 = pneg %p259
        %p674 = pneg %p256
        %s675 = sand.u32 %s246, 1
        %s676 = scalar_lea.sflag [#allocation4], %s675
        %s677 = sand.u32 %s246, 1
        %s678 = smul.addr %s677, 16
        %s679 = scalar_lea.vmem [#allocation13], %s678
        %p680 = pneg %p287
        %p681 = pneg %p284
        %s682 = sand.u32 %s49, 1
        %s683 = scalar_lea.sflag [#allocation15], %s682
        %s684 = sand.u32 %s274, 1
        %s685 = smul.addr %s684, 48
        %s686 = scalar_lea.vmem [#allocation14], %s685
        %p687 = pneg %p313
        %p688 = pneg %p310
        %s689 = sand.u32 %s49, 1
        %s690 = scalar_lea.sflag [#allocation15], %s689
        %s691 = sand.u32 %s300, 1
        %s692 = scalar_lea.vmem [#allocation16], %s691
        %p693 = pneg %p339
        %p694 = pneg %p336
        %s695 = sand.u32 %s49, 1
        %s696 = scalar_lea.sflag [#allocation18], %s695
        %s697 = sand.u32 %s326, 1
        %s698 = scalar_lea.vmem [#allocation17], %s697
        %p699 = pneg %p365
        %p700 = pneg %p362
        %s701 = sand.u32 %s49, 1
        %s702 = scalar_lea.sflag [#allocation18], %s701
        %s703 = sand.u32 %s352, 1
        %s704 = scalar_lea.vmem [#allocation19], %s703
        %p705 = pneg %p391
        %p706 = pneg %p388
        %s707 = sand.u32 %s49, 1
        %s708 = scalar_lea.sflag [#allocation21], %s707
        %s709 = sand.u32 %s378, 1
        %s710 = scalar_lea.vmem [#allocation20], %s709
        %p711 = pneg %p417
        %p712 = pneg %p414
        %s713 = sand.u32 %s49, 1
        %s714 = scalar_lea.sflag [#allocation21], %s713
        %s715 = sand.u32 %s404, 1
        %s716 = scalar_lea.vmem [#allocation22], %s715
        %s717 = smul.u32 2, %s53
        %s718 = smul.u32 3, %s54
        %s719 = smul.u32 3, %s54
        %s720 = smul.u32 3, %s54
        %s721 = smul.u32 3, %s54
        %s722 = smul.u32 48, %s54
        %s723 = smul.u32 2, %s53
        %s724 = smul.u32 2, %s53
        %s725 = smul.u32 3, %s54
        %v726 = vld [vmem:[%s573] sm:$0xff]
        %v727 = vld [vmem:[%s573 + $0x8] sm:$0xff]
        %v728 = vld [vmem:[%s3] sm:$0x1]
        %v729 = vlaneseq
        %v730 = vshrl.u32 %v729, 7
        %v731 = vadd.s32 %v730, 8
        %s732 = smul.u32 %s53, 16
        %v733 = vstv %s732
        %v734 = vadd.s32 %v733, %v730
        %v735 = vadd.s32 %v733, %v731
        %vm736 = vcmp.lt.s32.totalorder %v734, 40
        %vm737 = vcmp.lt.s32.totalorder %v735, 40
        %v738 = vsel %vm736, 1, 0
        %v739 = vsel %vm737, 1, 0
        %v740 = vcvt.s32.f32 %v738
        %v741 = vcvt.s32.f32 %v739
        %v743 = vperm.slane %v728, 0
        %v745 = vsub.f32 %v726, %v743
        %v746 = vsub.f32 %v727, %v743
        %v747 = vpack.c.bf16 %v746, %v745
        %v748 = vld [vmem:[%s583] sm:$0xff]
        %v749 = vld [vmem:[%s583 + $0x8] sm:$0xf]
        %v750 = vld [vmem:[%s583 + $0xc] sm:$0xff]
        %v751 = vld [vmem:[%s583 + $0x14] sm:$0xf]
        %v752 = vld [vmem:[%s583 + $0x18] sm:$0xff]
        %v753 = vld [vmem:[%s583 + $0x20] sm:$0xf]
        %v754 = vld [vmem:[%s583 + $0x24] sm:$0xff]
        %v755 = vld [vmem:[%s583 + $0x2c] sm:$0xf]
        %v756 = vld [vmem:[%s583 + $0x30] sm:$0xff]
        %v757 = vld [vmem:[%s583 + $0x38] sm:$0xf]
        %v758 = vld [vmem:[%s583 + $0x3c] sm:$0xff]
        %v759 = vld [vmem:[%s583 + $0x44] sm:$0xf]
        %v760 = vld [vmem:[%s583 + $0x48] sm:$0xff]
        %v761 = vld [vmem:[%s583 + $0x50] sm:$0xf]
        %v762 = vld [vmem:[%s583 + $0x54] sm:$0xff]
        %v763 = vld [vmem:[%s583 + $0x5c] sm:$0xf]
        %v764 = vld [vmem:[%s583 + $0x60] sm:$0xff]
        %v765 = vld [vmem:[%s583 + $0x68] sm:$0xf]
        %v766 = vld [vmem:[%s583 + $0x6c] sm:$0xff]
        %v767 = vld [vmem:[%s583 + $0x74] sm:$0xf]
        %v768 = vld [vmem:[%s583 + $0x78] sm:$0xff]
        %v769 = vld [vmem:[%s583 + $0x80] sm:$0xf]
        %v770 = vld [vmem:[%s583 + $0x84] sm:$0xff]
        %v771 = vld [vmem:[%s583 + $0x8c] sm:$0xf]
        %v772 = vld [vmem:[%s583 + $0x90] sm:$0xff]
        %v773 = vld [vmem:[%s583 + $0x98] sm:$0xf]
        %v774 = vld [vmem:[%s583 + $0x9c] sm:$0xff]
        %v775 = vld [vmem:[%s583 + $0xa4] sm:$0xf]
        %v776 = vld [vmem:[%s583 + $0xa8] sm:$0xff]
        %v777 = vld [vmem:[%s583 + $0xb0] sm:$0xf]
        %v778 = vld [vmem:[%s583 + $0xb4] sm:$0xff]
        %v779 = vld [vmem:[%s583 + $0xbc] sm:$0xf]
        %v780 = vld [vmem:[%s593] sm:$0x7]
        %v782 = vperm.slane %v780, 0
        %v783 = vperm.slane %v780, 1
        %v784 = vperm.slane %v780, 2
        %v820 = vunpack.c.l.b16 %v748
        %v821 = vunpack.c.h.b16 %v748
        %v822 = vunpack.c.l.b16 %v749
        %v823 = vunpack.c.l.b16 %v750
        %v824 = vunpack.c.h.b16 %v750
        %v825 = vunpack.c.l.b16 %v751
        %v826 = vunpack.c.l.b16 %v752
        %v827 = vunpack.c.h.b16 %v752
        %v828 = vunpack.c.l.b16 %v753
        %v829 = vunpack.c.l.b16 %v754
        %v830 = vunpack.c.h.b16 %v754
        %v831 = vunpack.c.l.b16 %v755
        %v832 = vunpack.c.l.b16 %v756
        %v833 = vunpack.c.h.b16 %v756
        %v834 = vunpack.c.l.b16 %v757
        %v835 = vunpack.c.l.b16 %v758
        %v836 = vunpack.c.h.b16 %v758
        %v837 = vunpack.c.l.b16 %v759
        %v838 = vunpack.c.l.b16 %v760
        %v839 = vunpack.c.h.b16 %v760
        %v840 = vunpack.c.l.b16 %v761
        %v841 = vunpack.c.l.b16 %v762
        %v842 = vunpack.c.h.b16 %v762
        %v843 = vunpack.c.l.b16 %v763
        %v844 = vunpack.c.l.b16 %v764
        %v845 = vunpack.c.h.b16 %v764
        %v846 = vunpack.c.l.b16 %v765
        %v847 = vunpack.c.l.b16 %v766
        %v848 = vunpack.c.h.b16 %v766
        %v849 = vunpack.c.l.b16 %v767
        %v850 = vunpack.c.l.b16 %v768
        %v851 = vunpack.c.h.b16 %v768
        %v852 = vunpack.c.l.b16 %v769
        %v853 = vunpack.c.l.b16 %v770
        %v854 = vunpack.c.h.b16 %v770
        %v855 = vunpack.c.l.b16 %v771
        %v856 = vunpack.c.l.b16 %v772
        %v857 = vunpack.c.h.b16 %v772
        %v858 = vunpack.c.l.b16 %v773
        %v859 = vunpack.c.l.b16 %v774
        %v860 = vunpack.c.h.b16 %v774
        %v861 = vunpack.c.l.b16 %v775
        %v862 = vunpack.c.l.b16 %v776
        %v863 = vunpack.c.h.b16 %v776
        %v864 = vunpack.c.l.b16 %v777
        %v865 = vunpack.c.l.b16 %v778
        %v866 = vunpack.c.h.b16 %v778
        %v867 = vunpack.c.l.b16 %v779
        %v868 = vpack.c.b16 %v823, %v820
        %v869 = vpack.c.b16 %v824, %v821
        %v870 = vpack.c.b16 %v825, %v822
        %v871 = vpack.c.b16 %v829, %v826
        %v872 = vpack.c.b16 %v830, %v827
        %v873 = vpack.c.b16 %v831, %v828
        %v874 = vpack.c.b16 %v835, %v832
        %v875 = vpack.c.b16 %v836, %v833
        %v876 = vpack.c.b16 %v837, %v834
        %v877 = vpack.c.b16 %v841, %v838
        %v878 = vpack.c.b16 %v842, %v839
        %v879 = vpack.c.b16 %v843, %v840
        %v880 = vpack.c.b16 %v847, %v844
        %v881 = vpack.c.b16 %v848, %v845
        %v882 = vpack.c.b16 %v849, %v846
        %v883 = vpack.c.b16 %v853, %v850
        %v884 = vpack.c.b16 %v854, %v851
        %v885 = vpack.c.b16 %v855, %v852
        %v886 = vpack.c.b16 %v859, %v856
        %v887 = vpack.c.b16 %v860, %v857
        %v888 = vpack.c.b16 %v861, %v858
        %v889 = vpack.c.b16 %v865, %v862
        %v890 = vpack.c.b16 %v866, %v863
        %v891 = vpack.c.b16 %v867, %v864
        %916 = vmatpush.bf16.msra.mxu0 %v889
        %917 = vmatpush.bf16.msra.mxu0 %v886
        %918 = vmatpush.bf16.msra.mxu0 %v883
        %919 = vmatpush.bf16.msra.mxu0 %v880
        %920 = vmatpush.bf16.msra.mxu0 %v877
        %921 = vmatpush.bf16.msra.mxu0 %v874
        %922 = vmatpush.bf16.msra.mxu0 %v871
        %923 = vmatpush.bf16.msra.mxu0 %v868
        %924 = vmatmul.bf16.gmra.mxu0 %v747
        %v925 = vpop.f32.mrf.mxu0
        %v926 = vadd.f32 %v782, %v925
        %v927 = vpop.f32.mrf.mxu0
        %v928 = vadd.f32 %v782, %v927
        %929 = vdwg.mxu0
        %930 = vmatpush.bf16.msra.mxu0 %v890
        %931 = vmatpush.bf16.msra.mxu0 %v887
        %932 = vmatpush.bf16.msra.mxu0 %v884
        %933 = vmatpush.bf16.msra.mxu0 %v881
        %934 = vmatpush.bf16.msra.mxu0 %v878
        %935 = vmatpush.bf16.msra.mxu0 %v875
        %936 = vmatpush.bf16.msra.mxu0 %v872
        %937 = vmatpush.bf16.msra.mxu0 %v869
        %938 = vmatmul.bf16.gmra.mxu0 %v747
        %v939 = vpop.f32.mrf.mxu0
        %v940 = vadd.f32 %v783, %v939
        %v941 = vpop.f32.mrf.mxu0
        %v942 = vadd.f32 %v783, %v941
        %943 = vdwg.mxu0
        %944 = vmatpush.bf16.msra.mxu0 %v891
        %945 = vmatpush.bf16.msra.mxu0 %v888
        %946 = vmatpush.bf16.msra.mxu0 %v885
        %947 = vmatpush.bf16.msra.mxu0 %v882
        %948 = vmatpush.bf16.msra.mxu0 %v879
        %949 = vmatpush.bf16.msra.mxu0 %v876
        %950 = vmatpush.bf16.msra.mxu0 %v873
        %951 = vmatpush.bf16.msra.mxu0 %v870
        %952 = vmatmul.bf16.gmra.mxu0 %v747
        %v953 = vpop.f32.mrf.mxu0
        %v954 = vadd.f32 %v784, %v953
        %v955 = vpop.f32.mrf.mxu0
        %v956 = vadd.f32 %v784, %v955
        %957 = vdwg.mxu0
        %v958 = vld [vmem:[%s603] sm:$0x7]
        %v960 = vperm.slane %v958, 0
        %v961 = vperm.slane %v958, 1
        %v962 = vperm.slane %v958, 2
        %vm966 = vcmp.gt.f32.partialorder %v926, %v960
        %vm967 = vcmp.gt.f32.partialorder %v940, %v961
        %vm968 = vcmp.gt.f32.partialorder %v954, %v962
        %vm969 = vcmp.gt.f32.partialorder %v928, %v960
        %vm970 = vcmp.gt.f32.partialorder %v942, %v961
        %vm971 = vcmp.gt.f32.partialorder %v956, %v962
        %v972 = vmax.f32 %v926, 0.0
        %v973 = vmax.f32 %v940, 0.0
        %v974 = vmax.f32 %v954, 0.0
        %v975 = vmax.f32 %v928, 0.0
        %v976 = vmax.f32 %v942, 0.0
        %v977 = vmax.f32 %v956, 0.0
        %v978 = vsel %vm966, %v972, 0.0
        %v979 = vsel %vm967, %v973, 0.0
        %v980 = vsel %vm968, %v974, 0.0
        %v981 = vsel %vm969, %v975, 0.0
        %v982 = vsel %vm970, %v976, 0.0
        %v983 = vsel %vm971, %v977, 0.0
        %v984 = vld [vmem:[%s613] sm:$0x7]
        %v986 = vperm.slane %v984, 0
        %v987 = vperm.slane %v984, 1
        %v988 = vperm.slane %v984, 2
        %v992 = vmul.f32 %v978, %v986
        %v993 = vmul.f32 %v979, %v987
        %v994 = vmul.f32 %v980, %v988
        %v995 = vmul.f32 %v981, %v986
        %v996 = vmul.f32 %v982, %v987
        %v997 = vmul.f32 %v983, %v988
        %v998 = vmul.f32 %v992, %v740
        %v999 = vmul.f32 %v993, %v740
        %v1000 = vmul.f32 %v994, %v740
        %v1001 = vmul.f32 %v995, %v741
        %v1002 = vmul.f32 %v996, %v741
        %v1003 = vmul.f32 %v997, %v741
        %1004 = vst [vmem:[%s686] sm:$0xff] %v998
        %1005 = vst [vmem:[%s686 + $0x8] sm:$0xff] %v999
        %1006 = vst [vmem:[%s686 + $0x10] sm:$0xff] %v1000
        %1007 = vst [vmem:[%s686 + $0x18] sm:$0xff] %v1001
        %1008 = vst [vmem:[%s686 + $0x20] sm:$0xff] %v1002
        %1009 = vst [vmem:[%s686 + $0x28] sm:$0xff] %v1003
        %v1010 = vpack.c.bf16 %v1001, %v998
        %v1011 = vpack.c.bf16 %v1002, %v999
        %v1012 = vpack.c.bf16 %v1003, %v1000
        %v1013 = vld [vmem:[%s623] sm:$0xf]
        %v1014 = vld [vmem:[%s623 + $0x4] sm:$0xf]
        %v1015 = vld [vmem:[%s623 + $0x8] sm:$0xf]
        %v1016 = vld [vmem:[%s623 + $0xc] sm:$0xf]
        %v1017 = vld [vmem:[%s623 + $0x10] sm:$0xf]
        %v1018 = vld [vmem:[%s623 + $0x14] sm:$0xf]
        %v1019 = vld [vmem:[%s623 + $0x18] sm:$0xf]
        %v1020 = vld [vmem:[%s623 + $0x1c] sm:$0xf]
        %v1021 = vld [vmem:[%s623 + $0x20] sm:$0xf]
        %v1022 = vld [vmem:[%s623 + $0x24] sm:$0xf]
        %v1023 = vld [vmem:[%s623 + $0x28] sm:$0xf]
        %v1024 = vld [vmem:[%s623 + $0x2c] sm:$0xf]
        %v1025 = vld [vmem:[%s623 + $0x30] sm:$0xf]
        %v1026 = vld [vmem:[%s623 + $0x34] sm:$0xf]
        %v1027 = vld [vmem:[%s623 + $0x38] sm:$0xf]
        %v1028 = vld [vmem:[%s623 + $0x3c] sm:$0xf]
        %v1029 = vld [vmem:[%s623 + $0x40] sm:$0xf]
        %v1030 = vld [vmem:[%s623 + $0x44] sm:$0xf]
        %v1031 = vld [vmem:[%s623 + $0x48] sm:$0xf]
        %v1032 = vld [vmem:[%s623 + $0x4c] sm:$0xf]
        %v1033 = vld [vmem:[%s623 + $0x50] sm:$0xf]
        %v1034 = vld [vmem:[%s623 + $0x54] sm:$0xf]
        %v1035 = vld [vmem:[%s623 + $0x58] sm:$0xf]
        %v1036 = vld [vmem:[%s623 + $0x5c] sm:$0xf]
        %v1037 = vld [vmem:[%s623 + $0x60] sm:$0xf]
        %v1038 = vld [vmem:[%s623 + $0x64] sm:$0xf]
        %v1039 = vld [vmem:[%s623 + $0x68] sm:$0xf]
        %v1040 = vld [vmem:[%s623 + $0x6c] sm:$0xf]
        %v1041 = vld [vmem:[%s623 + $0x70] sm:$0xf]
        %v1042 = vld [vmem:[%s623 + $0x74] sm:$0xf]
        %v1043 = vld [vmem:[%s623 + $0x78] sm:$0xf]
        %v1044 = vld [vmem:[%s623 + $0x7c] sm:$0xf]
        %v1045 = vld [vmem:[%s623 + $0x80] sm:$0xf]
        %v1046 = vld [vmem:[%s623 + $0x84] sm:$0xf]
        %v1047 = vld [vmem:[%s623 + $0x88] sm:$0xf]
        %v1048 = vld [vmem:[%s623 + $0x8c] sm:$0xf]
        %v1049 = vld [vmem:[%s623 + $0x90] sm:$0xf]
        %v1050 = vld [vmem:[%s623 + $0x94] sm:$0xf]
        %v1051 = vld [vmem:[%s623 + $0x98] sm:$0xf]
        %v1052 = vld [vmem:[%s623 + $0x9c] sm:$0xf]
        %v1053 = vld [vmem:[%s623 + $0xa0] sm:$0xf]
        %v1054 = vld [vmem:[%s623 + $0xa4] sm:$0xf]
        %v1055 = vld [vmem:[%s623 + $0xa8] sm:$0xf]
        %v1056 = vld [vmem:[%s623 + $0xac] sm:$0xf]
        %v1057 = vld [vmem:[%s623 + $0xb0] sm:$0xf]
        %v1058 = vld [vmem:[%s623 + $0xb4] sm:$0xf]
        %v1059 = vld [vmem:[%s623 + $0xb8] sm:$0xf]
        %v1060 = vld [vmem:[%s623 + $0xbc] sm:$0xf]
        %v1109 = vunpack.c.l.b16 %v1013
        %v1110 = vunpack.c.l.b16 %v1014
        %v1111 = vunpack.c.l.b16 %v1015
        %v1112 = vunpack.c.l.b16 %v1016
        %v1113 = vunpack.c.l.b16 %v1017
        %v1114 = vunpack.c.l.b16 %v1018
        %v1115 = vunpack.c.l.b16 %v1019
        %v1116 = vunpack.c.l.b16 %v1020
        %v1117 = vunpack.c.l.b16 %v1021
        %v1118 = vunpack.c.l.b16 %v1022
        %v1119 = vunpack.c.l.b16 %v1023
        %v1120 = vunpack.c.l.b16 %v1024
        %v1121 = vunpack.c.l.b16 %v1025
        %v1122 = vunpack.c.l.b16 %v1026
        %v1123 = vunpack.c.l.b16 %v1027
        %v1124 = vunpack.c.l.b16 %v1028
        %v1125 = vunpack.c.l.b16 %v1029
        %v1126 = vunpack.c.l.b16 %v1030
        %v1127 = vunpack.c.l.b16 %v1031
        %v1128 = vunpack.c.l.b16 %v1032
        %v1129 = vunpack.c.l.b16 %v1033
        %v1130 = vunpack.c.l.b16 %v1034
        %v1131 = vunpack.c.l.b16 %v1035
        %v1132 = vunpack.c.l.b16 %v1036
        %v1133 = vunpack.c.l.b16 %v1037
        %v1134 = vunpack.c.l.b16 %v1038
        %v1135 = vunpack.c.l.b16 %v1039
        %v1136 = vunpack.c.l.b16 %v1040
        %v1137 = vunpack.c.l.b16 %v1041
        %v1138 = vunpack.c.l.b16 %v1042
        %v1139 = vunpack.c.l.b16 %v1043
        %v1140 = vunpack.c.l.b16 %v1044
        %v1141 = vunpack.c.l.b16 %v1045
        %v1142 = vunpack.c.l.b16 %v1046
        %v1143 = vunpack.c.l.b16 %v1047
        %v1144 = vunpack.c.l.b16 %v1048
        %v1145 = vunpack.c.l.b16 %v1049
        %v1146 = vunpack.c.l.b16 %v1050
        %v1147 = vunpack.c.l.b16 %v1051
        %v1148 = vunpack.c.l.b16 %v1052
        %v1149 = vunpack.c.l.b16 %v1053
        %v1150 = vunpack.c.l.b16 %v1054
        %v1151 = vunpack.c.l.b16 %v1055
        %v1152 = vunpack.c.l.b16 %v1056
        %v1153 = vunpack.c.l.b16 %v1057
        %v1154 = vunpack.c.l.b16 %v1058
        %v1155 = vunpack.c.l.b16 %v1059
        %v1156 = vunpack.c.l.b16 %v1060
        %v1157 = vpack.c.b16 %v1110, %v1109
        %v1158 = vpack.c.b16 %v1112, %v1111
        %v1159 = vpack.c.b16 %v1114, %v1113
        %v1160 = vpack.c.b16 %v1116, %v1115
        %v1161 = vpack.c.b16 %v1118, %v1117
        %v1162 = vpack.c.b16 %v1120, %v1119
        %v1163 = vpack.c.b16 %v1122, %v1121
        %v1164 = vpack.c.b16 %v1124, %v1123
        %v1165 = vpack.c.b16 %v1126, %v1125
        %v1166 = vpack.c.b16 %v1128, %v1127
        %v1167 = vpack.c.b16 %v1130, %v1129
        %v1168 = vpack.c.b16 %v1132, %v1131
        %v1169 = vpack.c.b16 %v1134, %v1133
        %v1170 = vpack.c.b16 %v1136, %v1135
        %v1171 = vpack.c.b16 %v1138, %v1137
        %v1172 = vpack.c.b16 %v1140, %v1139
        %v1173 = vpack.c.b16 %v1142, %v1141
        %v1174 = vpack.c.b16 %v1144, %v1143
        %v1175 = vpack.c.b16 %v1146, %v1145
        %v1176 = vpack.c.b16 %v1148, %v1147
        %v1177 = vpack.c.b16 %v1150, %v1149
        %v1178 = vpack.c.b16 %v1152, %v1151
        %v1179 = vpack.c.b16 %v1154, %v1153
        %v1180 = vpack.c.b16 %v1156, %v1155
        %1205 = vmatpush.bf16.msra.mxu0 %v1164
        %1206 = vmatpush.bf16.msra.mxu0 %v1163
        %1207 = vmatpush.bf16.msra.mxu0 %v1162
        %1208 = vmatpush.bf16.msra.mxu0 %v1161
        %1209 = vmatpush.bf16.msra.mxu0 %v1160
        %1210 = vmatpush.bf16.msra.mxu0 %v1159
        %1211 = vmatpush.bf16.msra.mxu0 %v1158
        %1212 = vmatpush.bf16.msra.mxu0 %v1157
        %1213 = vmatmul.bf16.gmra.mxu0 %v1010
        %v1214 = vpop.f32.mrf.mxu0
        %v1215 = vadd.f32 0.0, %v1214
        %v1216 = vpop.f32.mrf.mxu0
        %v1217 = vadd.f32 0.0, %v1216
        %1218 = vdwg.mxu0
        %1219 = vmatpush.bf16.msra.mxu0 %v1172
        %1220 = vmatpush.bf16.msra.mxu0 %v1171
        %1221 = vmatpush.bf16.msra.mxu0 %v1170
        %1222 = vmatpush.bf16.msra.mxu0 %v1169
        %1223 = vmatpush.bf16.msra.mxu0 %v1168
        %1224 = vmatpush.bf16.msra.mxu0 %v1167
        %1225 = vmatpush.bf16.msra.mxu0 %v1166
        %1226 = vmatpush.bf16.msra.mxu0 %v1165
        %1227 = vmatmul.bf16.gmra.mxu0 %v1011
        %v1228 = vpop.f32.mrf.mxu0
        %v1229 = vadd.f32 %v1215, %v1228
        %v1230 = vpop.f32.mrf.mxu0
        %v1231 = vadd.f32 %v1217, %v1230
        %1232 = vdwg.mxu0
        %1233 = vmatpush.bf16.msra.mxu0 %v1180
        %1234 = vmatpush.bf16.msra.mxu0 %v1179
        %1235 = vmatpush.bf16.msra.mxu0 %v1178
        %1236 = vmatpush.bf16.msra.mxu0 %v1177
        %1237 = vmatpush.bf16.msra.mxu0 %v1176
        %1238 = vmatpush.bf16.msra.mxu0 %v1175
        %1239 = vmatpush.bf16.msra.mxu0 %v1174
        %1240 = vmatpush.bf16.msra.mxu0 %v1173
        %1241 = vmatmul.bf16.gmra.mxu0 %v1012
        %v1242 = vpop.f32.mrf.mxu0
        %v1243 = vadd.f32 %v1229, %v1242
        %v1244 = vpop.f32.mrf.mxu0
        %v1245 = vadd.f32 %v1231, %v1244
        %1246 = vdwg.mxu0
        %p1247 = scmp.eq.s32.totalorder %s54, 0
        // Predicated region
        $region73: #{tpu_custom_call.1} parent=47 // pred_check
          %p1248 = pneg %p1247
        $region74: #{tpu_custom_call.1} parent=47 // pred_check_branch
          %1250 = sbr.rel (%p1248) target = $region76
        $region75: #{tpu_custom_call.1} parent=47 // pred_region
          %1251 = vst [vmem:[%s679] sm:$0xff] %v1243
          %1252 = vst [vmem:[%s679 + $0x8] sm:$0xff] %v1245
          %1253 = vst [vmem:[%s710] sm:$0x1] 0.0
          %1254 = vst [vmem:[%s716] sm:$0x1] 0.0
          %v1255 = vadd.f32 %v726, %v727
          %v1256 = vrot.slane %v1255, 4
          %v1257 = vadd.f32 %v1255, %v1256
          %v1258 = vrot.slane %v1257, 2
          %v1259 = vadd.f32 %v1257, %v1258
          %v1260 = vrot.slane %v1259, 1
          %v1261 = vadd.f32 %v1259, %v1260
          %1262 = vst [vmem:[%s692] sm:$0x1] %v1261
          %v1263 = vmul.f32 %v726, %v726
          %v1264 = vmul.f32 %v727, %v727
          %v1265 = vadd.f32 %v1263, %v1264
          %v1266 = vrot.slane %v1265, 4
          %v1267 = vadd.f32 %v1265, %v1266
          %v1268 = vrot.slane %v1267, 2
          %v1269 = vadd.f32 %v1267, %v1268
          %v1270 = vrot.slane %v1269, 1
          %v1271 = vadd.f32 %v1269, %v1270
          %1272 = vst [vmem:[%s698] sm:$0x1] %v1271
        $region76: #{tpu_custom_call.1} parent=47 // pred_fallthru
          _
        %p1273 = scmp.gt.s32.totalorder %s54, 0
        // Predicated region
        $region77: #{tpu_custom_call.1} parent=47 // pred_check
          %p1274 = pneg %p1273
        $region78: #{tpu_custom_call.1} parent=47 // pred_check_branch
          %1276 = sbr.rel (%p1274) target = $region80
        $region79: #{tpu_custom_call.1} parent=47 // pred_region
          %v1277 = vld [vmem:[%s679] sm:$0xff]
          %v1278 = vld [vmem:[%s679 + $0x8] sm:$0xff]
          %v1279 = vadd.f32 %v1277, %v1243
          %v1280 = vadd.f32 %v1278, %v1245
          %1281 = vst [vmem:[%s679] sm:$0xff] %v1279
          %1282 = vst [vmem:[%s679 + $0x8] sm:$0xff] %v1280
        $region80: #{tpu_custom_call.1} parent=47 // pred_fallthru
          _
        %v1283 = vld [vmem:[%s710] sm:$0x1]
        %v1284 = vand.u32 2147483647, %v998
        %v1285 = vand.u32 2147483647, %v999
        %v1286 = vand.u32 2147483647, %v1000
        %v1287 = vand.u32 2147483647, %v1001
        %v1288 = vand.u32 2147483647, %v1002
        %v1289 = vand.u32 2147483647, %v1003
        %v1290 = vadd.f32 %v1284, %v1285
        %v1291 = vadd.f32 %v1290, %v1286
        %v1292 = vadd.f32 %v1291, %v1287
        %v1293 = vadd.f32 %v1292, %v1288
        %v1294 = vadd.f32 %v1293, %v1289
        %1295 = vadd.xlane.f32.xlu0 %v1294
        %v1296 = vpop.xlane.xlu0 %1295
        %v1297 = vrot.slane %v1296, 4
        %v1298 = vadd.f32 %v1296, %v1297
        %v1299 = vrot.slane %v1298, 2
        %v1300 = vadd.f32 %v1298, %v1299
        %v1301 = vrot.slane %v1300, 1
        %v1302 = vadd.f32 %v1300, %v1301
        %s1303 = vtos %v1302
        %v1304 = vstv %s1303
        %v1305 = vadd.f32 %v1283, %v1304
        %1306 = vst [vmem:[%s710] sm:$0x1] %v1305
        %v1307 = vld [vmem:[%s716] sm:$0x1]
        %vm1308 = vcmp.ne.f32.partialorder %v998, 0.0
        %vm1309 = vcmp.ne.f32.partialorder %v999, 0.0
        %vm1310 = vcmp.ne.f32.partialorder %v1000, 0.0
        %vm1311 = vcmp.ne.f32.partialorder %v1001, 0.0
        %vm1312 = vcmp.ne.f32.partialorder %v1002, 0.0
        %vm1313 = vcmp.ne.f32.partialorder %v1003, 0.0
        %v1314 = vsel %vm1308, 1, 0
        %v1315 = vsel %vm1309, 1, 0
        %v1316 = vsel %vm1310, 1, 0
        %v1317 = vsel %vm1311, 1, 0
        %v1318 = vsel %vm1312, 1, 0
        %v1319 = vsel %vm1313, 1, 0
        %v1320 = vcvt.s32.f32 %v1314
        %v1321 = vcvt.s32.f32 %v1315
        %v1322 = vcvt.s32.f32 %v1316
        %v1323 = vcvt.s32.f32 %v1317
        %v1324 = vcvt.s32.f32 %v1318
        %v1325 = vcvt.s32.f32 %v1319
        %v1326 = vadd.f32 %v1320, %v1321
        %v1327 = vadd.f32 %v1326, %v1322
        %v1328 = vadd.f32 %v1327, %v1323
        %v1329 = vadd.f32 %v1328, %v1324
        %v1330 = vadd.f32 %v1329, %v1325
        %1331 = vadd.xlane.f32.xlu0 %v1330
        %v1332 = vpop.xlane.xlu0 %1331
        %v1333 = vrot.slane %v1332, 4
        %v1334 = vadd.f32 %v1332, %v1333
        %v1335 = vrot.slane %v1334, 2
        %v1336 = vadd.f32 %v1334, %v1335
        %v1337 = vrot.slane %v1336, 1
        %v1338 = vadd.f32 %v1336, %v1337
        %s1339 = vtos %v1338
        %v1340 = vstv %s1339
        %v1341 = vadd.f32 %v1307, %v1340
        %1342 = vst [vmem:[%s716] sm:$0x1] %v1341
        %p1343 = scmp.eq.s32.totalorder %s54, 1
        // Predicated region
        $region81: #{tpu_custom_call.1} parent=47 // pred_check
          %p1344 = pneg %p1343
        $region82: #{tpu_custom_call.1} parent=47 // pred_check_branch
          %1346 = sbr.rel (%p1344) target = $region84
        $region83: #{tpu_custom_call.1} parent=47 // pred_region
          %v1347 = vld [vmem:[%s679] sm:$0xff]
          %v1348 = vld [vmem:[%s679 + $0x8] sm:$0xff]
          %v1349 = vadd.f32 %v1347, %v743
          %v1350 = vadd.f32 %v1348, %v743
          %1351 = vst [vmem:[%s679] sm:$0xff] %v1349
          %1352 = vst [vmem:[%s679 + $0x8] sm:$0xff] %v1350
          %v1353 = vsub.f32 %v1349, %v726
          %v1354 = vsub.f32 %v1350, %v727
          %v1355 = vmul.f32 %v1353, %v740
          %v1356 = vmul.f32 %v1354, %v741
          %v1357 = vmul.f32 %v1355, %v1355
          %v1358 = vmul.f32 %v1356, %v1356
          %v1359 = vadd.f32 %v1357, %v1358
          %1360 = vadd.xlane.f32.xlu0 %v1359
          %v1361 = vpop.xlane.xlu0 %1360
          %v1362 = vrot.slane %v1361, 4
          %v1363 = vadd.f32 %v1361, %v1362
          %v1364 = vrot.slane %v1363, 2
          %v1365 = vadd.f32 %v1363, %v1364
          %v1366 = vrot.slane %v1365, 1
          %v1367 = vadd.f32 %v1365, %v1366
          %s1368 = vtos %v1367
          %v1369 = vstv %s1368
          %1370 = vst [vmem:[%s704] sm:$0x1] %v1369
        $region84: #{tpu_custom_call.1} parent=47 // pred_fallthru
          _
        %s1371 = sand.u32 %s246, 1
        %s1372 = scalar_lea.sflag [#allocation4], %s1371
        %s1373 = sand.u32 %s246, 1
        %s1374 = smul.addr %s1373, 16
        %s1375 = scalar_lea.vmem [#allocation13], %s1374
        %s1376 = sand.u32 %s49, 1
        %s1377 = scalar_lea.sflag [#allocation15], %s1376
        %s1378 = sand.u32 %s274, 1
        %s1379 = smul.addr %s1378, 48
        %s1380 = scalar_lea.vmem [#allocation14], %s1379
        %s1381 = sand.u32 %s49, 1
        %s1382 = scalar_lea.sflag [#allocation15], %s1381
        %s1383 = sand.u32 %s300, 1
        %s1384 = scalar_lea.vmem [#allocation16], %s1383
        %s1385 = sand.u32 %s49, 1
        %s1386 = scalar_lea.sflag [#allocation18], %s1385
        %s1387 = sand.u32 %s326, 1
        %s1388 = scalar_lea.vmem [#allocation17], %s1387
        %s1389 = sand.u32 %s49, 1
        %s1390 = scalar_lea.sflag [#allocation18], %s1389
        %s1391 = sand.u32 %s352, 1
        %s1392 = scalar_lea.vmem [#allocation19], %s1391
        %s1393 = sand.u32 %s49, 1
        %s1394 = scalar_lea.sflag [#allocation21], %s1393
        %s1395 = sand.u32 %s378, 1
        %s1396 = scalar_lea.vmem [#allocation20], %s1395
        %s1397 = sand.u32 %s49, 1
        %s1398 = scalar_lea.sflag [#allocation21], %s1397
        %s1399 = sand.u32 %s404, 1
        %s1400 = scalar_lea.vmem [#allocation22], %s1399
        // Predicated region
        $region85: #{tpu_custom_call.1} parent=47 // pred_check
          %p1401 = pneg %p256
        $region86: #{tpu_custom_call.1} parent=47 // pred_check_branch
          %1403 = sbr.rel (%p1401) target = $region88
        $region87: #{tpu_custom_call.1} parent=47 // pred_region
          %s1404 = smul.u32 2, %s53
          %1406 = vsyncadd %s1372, 0
          %s1407 = smul.addr %s1404, 8
          %s1408 = scalar_lea.hbm %s7, %s1407
          %s1409 = sshll.u32 %s1375, 4
          %s1410 = int_to_ptr.vmem [resolvable:$true] %s1409
          %s1411 = sshll.u32 %s1408, 4
          %s1412 = int_to_ptr.hbm [resolvable:$true] %s1411
          %1417 = dma.vmem_to_hbm [thread:$0]  %s1410, 256, %s1412, %s1372, 128, 128, 8
        $region88: #{tpu_custom_call.1} parent=47 // pred_fallthru
          _
        // Predicated region
        $region89: #{tpu_custom_call.1} parent=47 // pred_check
          %p1418 = pneg %p284
        $region90: #{tpu_custom_call.1} parent=47 // pred_check_branch
          %1420 = sbr.rel (%p1418) target = $region92
        $region91: #{tpu_custom_call.1} parent=47 // pred_region
          %s1421 = smul.u32 2, %s53
          %s1422 = smul.u32 3, %s54
          %1424 = vsyncadd %s1377, 0
          %s1425 = smul.addr %s1421, 6
          %s1426 = sadd.s32 %s1422, %s1425
          %s1427 = smul.addr %s1426, 8
          %s1428 = scalar_lea.hbm %s8, %s1427
          %s1429 = sshll.u32 %s1380, 4
          %s1430 = int_to_ptr.vmem [resolvable:$true] %s1429
          %s1431 = sshll.u32 %s1428, 4
          %s1432 = int_to_ptr.hbm [resolvable:$true] %s1431
          %1437 = dma.vmem_to_hbm [thread:$0]  %s1430, 768, %s1432, %s1377, 384, 768, 24
        $region92: #{tpu_custom_call.1} parent=47 // pred_fallthru
          _
        // Predicated region
        $region93: #{tpu_custom_call.1} parent=47 // pred_check
          %p1438 = pneg %p310
        $region94: #{tpu_custom_call.1} parent=47 // pred_check_branch
          %1440 = sbr.rel (%p1438) target = $region96
        $region95: #{tpu_custom_call.1} parent=47 // pred_region
          %1442 = vsyncadd %s1382, 0
          %s1443 = scalar_lea.hbm %s9, %s53
          %s1445 = sshll.u32 %s1384, 4
          %s1446 = int_to_ptr.vmem [resolvable:$true] %s1445
          %s1447 = sshll.u32 %s1443, 4
          %s1448 = int_to_ptr.hbm [resolvable:$true] %s1447
          %1450 = dma.vmem_to_hbm [thread:$0]  %s1446, 16, %s1448, %s1382
        $region96: #{tpu_custom_call.1} parent=47 // pred_fallthru
          _
        // Predicated region
        $region97: #{tpu_custom_call.1} parent=47 // pred_check
          %p1451 = pneg %p336
        $region98: #{tpu_custom_call.1} parent=47 // pred_check_branch
          %1453 = sbr.rel (%p1451) target = $region100
        $region99: #{tpu_custom_call.1} parent=47 // pred_region
          %1455 = vsyncadd %s1386, 0
          %s1456 = scalar_lea.hbm %s10, %s53
          %s1458 = sshll.u32 %s1388, 4
          %s1459 = int_to_ptr.vmem [resolvable:$true] %s1458
          %s1460 = sshll.u32 %s1456, 4
          %s1461 = int_to_ptr.hbm [resolvable:$true] %s1460
          %1463 = dma.vmem_to_hbm [thread:$0]  %s1459, 16, %s1461, %s1386
        $region100: #{tpu_custom_call.1} parent=47 // pred_fallthru
          _
        // Predicated region
        $region101: #{tpu_custom_call.1} parent=47 // pred_check
          %p1464 = pneg %p362
        $region102: #{tpu_custom_call.1} parent=47 // pred_check_branch
          %1466 = sbr.rel (%p1464) target = $region104
        $region103: #{tpu_custom_call.1} parent=47 // pred_region
          %1468 = vsyncadd %s1390, 0
          %s1469 = scalar_lea.hbm %s11, %s53
          %s1471 = sshll.u32 %s1392, 4
          %s1472 = int_to_ptr.vmem [resolvable:$true] %s1471
          %s1473 = sshll.u32 %s1469, 4
          %s1474 = int_to_ptr.hbm [resolvable:$true] %s1473
          %1476 = dma.vmem_to_hbm [thread:$0]  %s1472, 16, %s1474, %s1390
        $region104: #{tpu_custom_call.1} parent=47 // pred_fallthru
          _
        // Predicated region
        $region105: #{tpu_custom_call.1} parent=47 // pred_check
          %p1477 = pneg %p388
        $region106: #{tpu_custom_call.1} parent=47 // pred_check_branch
          %1479 = sbr.rel (%p1477) target = $region108
        $region107: #{tpu_custom_call.1} parent=47 // pred_region
          %1481 = vsyncadd %s1394, 0
          %s1482 = scalar_lea.hbm %s12, %s53
          %s1484 = sshll.u32 %s1396, 4
          %s1485 = int_to_ptr.vmem [resolvable:$true] %s1484
          %s1486 = sshll.u32 %s1482, 4
          %s1487 = int_to_ptr.hbm [resolvable:$true] %s1486
          %1489 = dma.vmem_to_hbm [thread:$0]  %s1485, 16, %s1487, %s1394
        $region108: #{tpu_custom_call.1} parent=47 // pred_fallthru
          _
        // Predicated region
        $region109: #{tpu_custom_call.1} parent=47 // pred_check
          %p1490 = pneg %p414
        $region110: #{tpu_custom_call.1} parent=47 // pred_check_branch
          %1492 = sbr.rel (%p1490) target = $region112
        $region111: #{tpu_custom_call.1} parent=47 // pred_region
          %1494 = vsyncadd %s1398, 0
          %s1495 = scalar_lea.hbm %s13, %s53
          %s1497 = sshll.u32 %s1400, 4
          %s1498 = int_to_ptr.vmem [resolvable:$true] %s1497
          %s1499 = sshll.u32 %s1495, 4
          %s1500 = int_to_ptr.hbm [resolvable:$true] %s1499
          %1502 = dma.vmem_to_hbm [thread:$0]  %s1498, 16, %s1500, %s1398
        $region112: #{tpu_custom_call.1} parent=47 // pred_fallthru
          _
      $region48: #{tpu_custom_call.1} parent=5 // pred_fallthru
        _
      %p1503 = scmp.le.s32.totalorder 2, %s44
      // Predicated region
      $region113: #{tpu_custom_call.1} parent=5 // pred_check
        %p1504 = pneg %p1503
      $region114: #{tpu_custom_call.1} parent=5 // pred_check_branch
        %1506 = sbr.rel (%p1504) target = $region116
      $region115: #{tpu_custom_call.1} parent=5 // pred_region
        %s1507 = ssub.s32 %s44, 2
        // Predicated region
        $region117: #{tpu_custom_call.1} parent=115 // pred_check
          %p1508 = pneg %p262
        $region118: #{tpu_custom_call.1} parent=115 // pred_check_branch
          %1510 = sbr.rel (%p1508) target = $region120
        $region119: #{tpu_custom_call.1} parent=115 // pred_region
          %s1511 = sand.u32 %s247, 1
          %s1512 = scalar_lea.sflag [#allocation4], %s1511
          %s1513 = sand.u32 %s247, 1
          %s1514 = smul.addr %s1513, 16
          %s1515 = scalar_lea.vmem [#allocation13], %s1514
          %1517 = dma.done %s1512, 256
        $region120: #{tpu_custom_call.1} parent=115 // pred_fallthru
          _
        // Predicated region
        $region121: #{tpu_custom_call.1} parent=115 // pred_check
          %p1518 = pneg %p290
        $region122: #{tpu_custom_call.1} parent=115 // pred_check_branch
          %1520 = sbr.rel (%p1518) target = $region124
        $region123: #{tpu_custom_call.1} parent=115 // pred_region
          %s1521 = sand.u32 %s50, 1
          %s1522 = scalar_lea.sflag [#allocation15], %s1521
          %s1523 = sand.u32 %s275, 1
          %s1524 = smul.addr %s1523, 48
          %s1525 = scalar_lea.vmem [#allocation14], %s1524
          %1527 = dma.done %s1522, 768
        $region124: #{tpu_custom_call.1} parent=115 // pred_fallthru
          _
        // Predicated region
        $region125: #{tpu_custom_call.1} parent=115 // pred_check
          %p1528 = pneg %p316
        $region126: #{tpu_custom_call.1} parent=115 // pred_check_branch
          %1530 = sbr.rel (%p1528) target = $region128
        $region127: #{tpu_custom_call.1} parent=115 // pred_region
          %s1531 = sand.u32 %s50, 1
          %s1532 = scalar_lea.sflag [#allocation15], %s1531
          %s1533 = sand.u32 %s301, 1
          %s1534 = scalar_lea.vmem [#allocation16], %s1533
          %1536 = dma.done %s1532, 16
        $region128: #{tpu_custom_call.1} parent=115 // pred_fallthru
          _
        // Predicated region
        $region129: #{tpu_custom_call.1} parent=115 // pred_check
          %p1537 = pneg %p342
        $region130: #{tpu_custom_call.1} parent=115 // pred_check_branch
          %1539 = sbr.rel (%p1537) target = $region132
        $region131: #{tpu_custom_call.1} parent=115 // pred_region
          %s1540 = sand.u32 %s50, 1
          %s1541 = scalar_lea.sflag [#allocation18], %s1540
          %s1542 = sand.u32 %s327, 1
          %s1543 = scalar_lea.vmem [#allocation17], %s1542
          %1545 = dma.done %s1541, 16
        $region132: #{tpu_custom_call.1} parent=115 // pred_fallthru
          _
        // Predicated region
        $region133: #{tpu_custom_call.1} parent=115 // pred_check
          %p1546 = pneg %p368
        $region134: #{tpu_custom_call.1} parent=115 // pred_check_branch
          %1548 = sbr.rel (%p1546) target = $region136
        $region135: #{tpu_custom_call.1} parent=115 // pred_region
          %s1549 = sand.u32 %s50, 1
          %s1550 = scalar_lea.sflag [#allocation18], %s1549
          %s1551 = sand.u32 %s353, 1
          %s1552 = scalar_lea.vmem [#allocation19], %s1551
          %1554 = dma.done %s1550, 16
        $region136: #{tpu_custom_call.1} parent=115 // pred_fallthru
          _
        // Predicated region
        $region137: #{tpu_custom_call.1} parent=115 // pred_check
          %p1555 = pneg %p394
        $region138: #{tpu_custom_call.1} parent=115 // pred_check_branch
          %1557 = sbr.rel (%p1555) target = $region140
        $region139: #{tpu_custom_call.1} parent=115 // pred_region
          %s1558 = sand.u32 %s50, 1
          %s1559 = scalar_lea.sflag [#allocation21], %s1558
          %s1560 = sand.u32 %s379, 1
          %s1561 = scalar_lea.vmem [#allocation20], %s1560
          %1563 = dma.done %s1559, 16
        $region140: #{tpu_custom_call.1} parent=115 // pred_fallthru
          _
        // Predicated region
        $region141: #{tpu_custom_call.1} parent=115 // pred_check
          %p1564 = pneg %p420
        $region142: #{tpu_custom_call.1} parent=115 // pred_check_branch
          %1566 = sbr.rel (%p1564) target = $region144
        $region143: #{tpu_custom_call.1} parent=115 // pred_region
          %s1567 = sand.u32 %s50, 1
          %s1568 = scalar_lea.sflag [#allocation21], %s1567
          %s1569 = sand.u32 %s405, 1
          %s1570 = scalar_lea.vmem [#allocation22], %s1569
          %1572 = dma.done %s1568, 16
        $region144: #{tpu_custom_call.1} parent=115 // pred_fallthru
          _
      $region116: #{tpu_custom_call.1} parent=5 // pred_fallthru
        _
    $region6: #{tpu_custom_call.1} parent=1 // loop_footer
      %s48 = sadd.s32 1, %s44
    $region7: #{tpu_custom_call.1} parent=1 // loop_footer_branch
      %43 = sbr.rel target = $region3
    $region8: #{tpu_custom_call.1} parent=1 // loop_exit
      _
    %1573 = vsyncpa [#allocation3], 1
    %s1574 = scalar_lea.sflag [#allocation3], 1
    %1575 = vsyncpa %s1574, 1
    %1576 = vsyncpa [#allocation6], 1
    %s1577 = scalar_lea.sflag [#allocation6], 1
    %1578 = vsyncpa %s1577, 1
    %1579 = vsyncpa [#allocation9], 1
    %s1580 = scalar_lea.sflag [#allocation9], 1
    %1581 = vsyncpa %s1580, 1
    %1582 = vsyncpa [#allocation12], 1
    %s1583 = scalar_lea.sflag [#allocation12], 1
    %1584 = vsyncpa %s1583, 1
    %1585 = vsyncpa [#allocation4], 1
    %s1586 = scalar_lea.sflag [#allocation4], 1
    %1587 = vsyncpa %s1586, 1
    %1588 = vsyncpa [#allocation15], 1
    %s1589 = scalar_lea.sflag [#allocation15], 1
    %1590 = vsyncpa %s1589, 1
    %1591 = vsyncpa [#allocation18], 1
    %s1592 = scalar_lea.sflag [#allocation18], 1
    %1593 = vsyncpa %s1592, 1
    %1594 = vsyncpa [#allocation21], 1
    %s1595 = scalar_lea.sflag [#allocation21], 1
    %1596 = vsyncpa %s1595, 1

</llo_original>
